<compile_context>
chip_gen: v7x
topology: tpu7x:2x2x1
jax: 0.10.0
libtpu: 0.0.40
codegen_flags: <defaults>
</compile_context>

<pallas_src>
import jax
import jax.numpy as jnp
from jax.experimental import pallas as pl
from jax.experimental.pallas import tpu as pltpu


def _round_up(x, m):
    return (x + m - 1) // m * m


def _recurrence(img_ref, fc1w_ref, fc1b_ref, cap_ref,
                wih_img_ref, wih_cap_ref, whh_ref, brnn_ref,
                h_out_ref, gate_ref):
    """tanh-RNN recurrence.  Writes f32 hidden states (T*Bp, Hp) to h_out_ref.

    cap_ref is the caption embeddings flattened to (T*Bp, Ep) (row = t*Bp + b).
    gate_ref is an f32 VMEM scratch of shape (T*Bp, Hp).
    """
    cdt = whh_ref.dtype                      # MXU compute dtype (bf16 or f32)
    Bp = img_ref.shape[0]
    M, Hp = h_out_ref.shape
    T = M // Bp

    # --- time-invariant image pathway: fc1 + ReLU (f32 elementwise) --------
    proj = jnp.maximum(
        jnp.dot(img_ref[...], fc1w_ref[...],
                preferred_element_type=jnp.float32) + fc1b_ref[...], 0.0)

    # Image contribution to the RNN pre-activation, RNN bias folded in once.
    img_gate = (jnp.dot(proj.astype(cdt), wih_img_ref[...],
                        preferred_element_type=jnp.float32)
                + brnn_ref[...])                                   # (Bp, Hp) f32

    # --- caption-input matmul hoisted out of the serial loop ---------------
    # One big (M, Ep) @ (Ep, Hp) MXU matmul instead of T tiny (Bp, Ep) ones.
    gate_ref[...] = jnp.dot(cap_ref[...], wih_cap_ref[...],
                            preferred_element_type=jnp.float32)    # (M, Hp) f32

    w_hh = whh_ref[...]

    def step(t, h_prev):
        row = pl.multiple_of(t * Bp, Bp)
        pre = (gate_ref[pl.ds(row, Bp), :] + img_gate
               + jnp.dot(h_prev, w_hh, preferred_element_type=jnp.float32))
        h_new = jnp.tanh(pre)                                      # f32
        h_out_ref[pl.ds(row, Bp), :] = h_new                       # aligned store
        return h_new.astype(cdt)                                   # MXU-dtype carry

    # Full unroll only for short sequences; partial unroll otherwise (each
    # step is data-dependent on the previous one, so no extra overlap exists).
    jax.lax.fori_loop(0, T, step, jnp.zeros((Bp, Hp), cdt),
                      unroll=True if T <= 16 else 4)


def rnn_kernel(img_ref, fc1w_ref, fc1b_ref, cap_ref,
               wih_img_ref, wih_cap_ref, whh_ref, brnn_ref,
               h_out_ref, gate_ref):
    """Standalone recurrence kernel: emits hidden states as (T*Bp, Hp) f32."""
    _recurrence(img_ref, fc1w_ref, fc1b_ref, cap_ref,
                wih_img_ref, wih_cap_ref, whh_ref, brnn_ref,
                h_out_ref, gate_ref)


def rnn_proj_fused_kernel(img_ref, fc1w_ref, fc1b_ref, cap_ref,
                          wih_img_ref, wih_cap_ref, whh_ref, brnn_ref,
                          fc2w_ref, fc2b_ref, outw_ref, outb_ref,
                          o_ref, hs_ref, gate_ref):
    """Recurrence + fc2 + ReLU + vocab projection in one call (small shapes)."""
    _recurrence(img_ref, fc1w_ref, fc1b_ref, cap_ref,
                wih_img_ref, wih_cap_ref, whh_ref, brnn_ref,
                hs_ref, gate_ref)
    dec = jnp.maximum(
        jnp.dot(hs_ref[...].astype(fc2w_ref.dtype), fc2w_ref[...],
                preferred_element_type=jnp.float32) + fc2b_ref[...], 0.0)
    o_ref[...] = (jnp.dot(dec.astype(outw_ref.dtype), outw_ref[...],
                          preferred_element_type=jnp.float32)
                  + outb_ref[...]).astype(o_ref.dtype)


def proj_kernel(h_ref, fc2w_ref, fc2b_ref, outw_ref, outb_ref, o_ref):
    """fc2 + ReLU + vocab projection for a (TM, Hp) row tile x (TN) vocab tile."""
    dec = jnp.maximum(
        jnp.dot(h_ref[...], fc2w_ref[...],
                preferred_element_type=jnp.float32) + fc2b_ref[...], 0.0)
    o_ref[...] = (jnp.dot(dec.astype(outw_ref.dtype), outw_ref[...],
                          preferred_element_type=jnp.float32)
                  + outb_ref[...]).astype(o_ref.dtype)


def captioning_forward(img_features, captions, params,
                       compute_dtype=jnp.bfloat16, fuse=None):
    """img_features: (B, F) f32, captions: (B, T) int32 -> (B, T, V) f32.

    compute_dtype: dtype of the MXU inputs (bf16 recommended on v5e/v6e/v7x;
    accumulation and all elementwise math stay f32).  fuse=None picks the
    single-call fused kernel automatically when everything fits in VMEM.
    """
    B, F = img_features.shape
    T = captions.shape[1]
    E = params["fc1_w"].shape[1]
    H = params["w_hh"].shape[0]
    V = params["out_w"].shape[1]

    Bp = _round_up(B, 8)          # f32 sublane multiple
    Fp = _round_up(F, 128)        # lane multiples (incl. fc1 contraction dim)
    Ep = _round_up(E, 128)
    Hp = _round_up(H, 128)
    Vp = _round_up(V, 128)
    TN = min(Vp, 512)             # vocab tile for the projection
    Vp = _round_up(Vp, TN)

    cdt = compute_dtype
    f32 = jnp.float32

    def pad2(x, r, c, dtype):
        return jnp.pad(x, ((0, r - x.shape[0]), (0, c - x.shape[1]))).astype(dtype)

    fc1_w = pad2(params["fc1_w"], Fp, Ep, cdt)
    fc1_b = pad2(params["fc1_b"], 1, Ep, f32)
    # Split w_ih into image half (rows 0:E) and caption half (rows E:2E) so
    # both contributions can be hoisted out of the recurrence.
    w_ih_img = pad2(params["w_ih"][:E], Ep, Hp, cdt)
    w_ih_cap = pad2(params["w_ih"][E:], Ep, Hp, cdt)
    w_hh = pad2(params["w_hh"], Hp, Hp, cdt)
    b_rnn = pad2(params["b_rnn"], 1, Hp, f32)
    fc2_w = pad2(params["fc2_w"], Hp, Ep, cdt)
    fc2_b = pad2(params["fc2_b"], 1, Ep, f32)
    out_w = pad2(params["out_w"], Ep, Vp, cdt)
    out_b = pad2(params["out_b"], 1, Vp, f32)

    img_p = jnp.pad(img_features, ((0, Bp - B), (0, Fp - F))).astype(cdt)

    # Embedding gather (glue, plain JAX); padding_idx=0 row is zeros.
    # Dropout layers are inference-mode identities.
    cap_emb = jnp.take(params["emb"], captions, axis=0)            # (B, T, E)
    cap_emb = jnp.transpose(cap_emb, (1, 0, 2))                    # (T, B, E)
    cap_emb = jnp.pad(cap_emb,
                      ((0, 0), (0, Bp - B), (0, Ep - E)))          # (T, Bp, Ep)
    M = T * Bp
    cap_2d = cap_emb.reshape(M, Ep).astype(cdt)                    # row = t*Bp + b

    # Decide whether to fuse the projection into the RNN kernel (only when
    # the whole problem comfortably fits in VMEM -- toy / decode-ish shapes).
    isz = jnp.dtype(cdt).itemsize
    approx_vmem = (M * Ep * isz + M * Hp * (4 + 4) + Bp * Fp * isz
                   + Fp * Ep * isz + 2 * Ep * Hp * isz + Hp * Hp * isz
                   + Hp * Ep * isz + Ep * Vp * isz + M * Vp * 4)
    if fuse is None:
        fuse = approx_vmem < (8 << 20)

    rnn_ins = (img_p, fc1_w, fc1_b, cap_2d, w_ih_img, w_ih_cap, w_hh, b_rnn)
    cparams = pltpu.CompilerParams(vmem_limit_bytes=64 * 1024 * 1024)

    if fuse:
        # ---- single fused call: recurrence + fc2 + vocab projection --------
        logits = pl.pallas_call(
            rnn_proj_fused_kernel,
            out_shape=jax.ShapeDtypeStruct((M, Vp), jnp.float32),
            scratch_shapes=[pltpu.VMEM((M, Hp), jnp.float32),   # hidden states
                            pltpu.VMEM((M, Hp), jnp.float32)],  # hoisted gate
            compiler_params=cparams,
        )(*rnn_ins, fc2_w, fc2_b, out_w, out_b)
    else:
        # ---- kernel 1: sequential RNN (single call) -------------------------
        hs = pl.pallas_call(
            rnn_kernel,
            out_shape=jax.ShapeDtypeStruct((M, Hp), jnp.float32),
            scratch_shapes=[pltpu.VMEM((M, Hp), jnp.float32)],   # hoisted gate
            compiler_params=cparams,
        )(*rnn_ins)
        hs = hs.astype(cdt)         # halve HBM traffic into the projection

        # ---- kernel 2: tiled, lane-dense fc2 + vocab projection ------------
        TM = min(256, M)            # M is a multiple of 8 (and of 16 if >=256)
        Mp = _round_up(M, TM)
        if Mp != M:
            hs = jnp.pad(hs, ((0, Mp - M), (0, 0)))

        const = lambda i, j: (0, 0)
        logits = pl.pallas_call(
            proj_kernel,
            out_shape=jax.ShapeDtypeStruct((Mp, Vp), jnp.float32),
            grid_spec=pltpu.PrefetchScalarGridSpec(
                num_scalar_prefetch=0,
                grid=(Mp // TM, Vp // TN),
                in_specs=[
                    pl.BlockSpec((TM, Hp), lambda i, j: (i, 0)),   # hidden rows
                    pl.BlockSpec((Hp, Ep), const),                 # fc2_w
                    pl.BlockSpec((1, Ep), const),                  # fc2_b
                    pl.BlockSpec((Ep, TN), lambda i, j: (0, j)),   # out_w tile
                    pl.BlockSpec((1, TN), lambda i, j: (0, j)),    # out_b tile
                ],
                out_specs=pl.BlockSpec((TM, TN), lambda i, j: (i, j)),
            ),
            compiler_params=pltpu.CompilerParams(
                dimension_semantics=("parallel", "parallel"),
                vmem_limit_bytes=64 * 1024 * 1024),
        )(hs, fc2_w, fc2_b, out_w, out_b)

    logits = logits[:M].reshape(T, Bp, Vp)[:, :B, :V]              # (T, B, V)
    return jnp.transpose(logits, (1, 0, 2))                        # (B, T, V)


def reference_forward(img_features, captions, params):
    """Pure-JAX f32 reference matching the PyTorch forward (eval mode)."""
    B, _ = img_features.shape
    T = captions.shape[1]
    H = params["w_hh"].shape[0]
    proj = jax.nn.relu(img_features @ params["fc1_w"] + params["fc1_b"])
    emb = jnp.take(params["emb"], captions, axis=0)                # (B, T, E)
    x = jnp.concatenate(
        [jnp.repeat(proj[:, None, :], T, axis=1), emb], axis=-1)   # (B, T, 2E)
    x_t = jnp.transpose(x, (1, 0, 2))                              # (T, B, 2E)

    def step(h, xt):
        h_new = jnp.tanh(xt @ params["w_ih"] + h @ params["w_hh"]
                         + params["b_rnn"])
        return h_new, h_new

    _, hs = jax.lax.scan(step, jnp.zeros((B, H), jnp.float32), x_t)  # (T,B,H)
    dec = jax.nn.relu(hs @ params["fc2_w"] + params["fc2_b"])
    out = dec @ params["out_w"] + params["out_b"]                  # (T, B, V)
    return jnp.transpose(out, (1, 0, 2))


def make_params(key, feature_dim, embedding_dim, hidden_dim, vocab_size):
    ks = jax.random.split(key, 12)
    s = 0.1
    emb = s * jax.random.normal(ks[0], (vocab_size, embedding_dim), jnp.float32)
    emb = emb.at[0].set(0.0)   # padding_idx=0
    return {
        "fc1_w": s * jax.random.normal(ks[1], (feature_dim, embedding_dim), jnp.float32),
        "fc1_b": s * jax.random.normal(ks[2], (1, embedding_dim), jnp.float32),
        "emb": emb,
        "w_ih": s * jax.random.normal(ks[3], (2 * embedding_dim, hidden_dim), jnp.float32),
        "w_hh": s * jax.random.normal(ks[4], (hidden_dim, hidden_dim), jnp.float32),
        "b_rnn": s * jax.random.normal(ks[5], (1, hidden_dim), jnp.float32),
        "fc2_w": s * jax.random.normal(ks[6], (hidden_dim, embedding_dim), jnp.float32),
        "fc2_b": s * jax.random.normal(ks[7], (1, embedding_dim), jnp.float32),
        "out_w": s * jax.random.normal(ks[8], (embedding_dim, vocab_size), jnp.float32),
        "out_b": s * jax.random.normal(ks[9], (1, vocab_size), jnp.float32),
    }


if __name__ == "__main__":
    B, T = 2, 8
    FEATURE_DIM, EMBED_DIM, HIDDEN_DIM, VOCAB = 64, 32, 32, 50

    key = jax.random.PRNGKey(0)
    k_par, k_img, k_cap = jax.random.split(key, 3)

    params = make_params(k_par, FEATURE_DIM, EMBED_DIM, HIDDEN_DIM, VOCAB)
    img_features = jax.random.normal(k_img, (B, FEATURE_DIM), jnp.float32)
    captions = jax.random.randint(k_cap, (B, T), 0, VOCAB, jnp.int32)

    ref = reference_forward(img_features, captions, params)

    # 1) Production default: bf16 MXU inputs (fused single call at toy size).
    out = captioning_forward(img_features, captions, params)
    out = jax.block_until_ready(out)
    assert out.shape == (B, T, VOCAB)
    assert jnp.allclose(out, ref, atol=5e-2, rtol=5e-2), "bf16 path mismatch"

    # 2) f32 fused path -- tight structural check of the fused kernel.
    out_f32_fused = captioning_forward(img_features, captions, params,
                                       compute_dtype=jnp.float32, fuse=True)
    out_f32_fused = jax.block_until_ready(out_f32_fused)
    assert jnp.allclose(out_f32_fused, ref, atol=1e-4, rtol=1e-4), \
        "f32 fused path mismatch"

    # 3) f32 two-kernel path (RNN + tiled vocab projection) -- tight check.
    out_f32_split = captioning_forward(img_features, captions, params,
                                       compute_dtype=jnp.float32, fuse=False)
    out_f32_split = jax.block_until_ready(out_f32_split)
    assert jnp.allclose(out_f32_split, ref, atol=1e-4, rtol=1e-4), \
        "f32 split path mismatch"

    print("KERNEL_OK")
</pallas_src>

<mosaic_0001>
module attributes {stable_mosaic.version = 11 : i64} {
  func.func @rnn_proj_fused_kernel(%arg0: memref<8x128xbf16, #tpu.memory_space<vmem>>, %arg1: memref<128x128xbf16, #tpu.memory_space<vmem>>, %arg2: memref<1x128xf32, #tpu.memory_space<vmem>>, %arg3: memref<64x128xbf16, #tpu.memory_space<vmem>>, %arg4: memref<128x128xbf16, #tpu.memory_space<vmem>>, %arg5: memref<128x128xbf16, #tpu.memory_space<vmem>>, %arg6: memref<128x128xbf16, #tpu.memory_space<vmem>>, %arg7: memref<1x128xf32, #tpu.memory_space<vmem>>, %arg8: memref<128x128xbf16, #tpu.memory_space<vmem>>, %arg9: memref<1x128xf32, #tpu.memory_space<vmem>>, %arg10: memref<128x128xbf16, #tpu.memory_space<vmem>>, %arg11: memref<1x128xf32, #tpu.memory_space<vmem>>, %arg12: memref<64x128xf32, #tpu.memory_space<vmem>>, %arg13: memref<64x128xf32, #tpu.memory_space<vmem>>, %arg14: memref<64x128xf32, #tpu.memory_space<vmem>>) attributes {dimension_semantics = [], scalar_prefetch = 0 : i64, scratch_operands = 2 : i64, tpu.core_type = #tpu.core_type<tc>} {
    %c0 = arith.constant 0 : index
    %c0_0 = arith.constant 0 : index
    %0 = vector.load %arg0[%c0, %c0_0] : memref<8x128xbf16, #tpu.memory_space<vmem>>, vector<8x128xbf16>
    %c0_1 = arith.constant 0 : index
    %c0_2 = arith.constant 0 : index
    %1 = vector.load %arg1[%c0_1, %c0_2] : memref<128x128xbf16, #tpu.memory_space<vmem>>, vector<128x128xbf16>
    %cst = arith.constant dense<0.000000e+00> : vector<8x128xf32>
    %2 = tpu.matmul %0, %1, %cst {dimension_numbers = #tpu.dot_dimension_numbers<[1], [0], [0], [1], [0, 0, 1, 1], [], []>} : vector<8x128xbf16>, vector<128x128xbf16>, vector<8x128xf32> -> vector<8x128xf32>
    %c0_3 = arith.constant 0 : index
    %c0_4 = arith.constant 0 : index
    %3 = vector.load %arg2[%c0_3, %c0_4] : memref<1x128xf32, #tpu.memory_space<vmem>>, vector<1x128xf32>
    %4 = vector.broadcast %3 : vector<1x128xf32> to vector<8x128xf32>
    %5 = arith.addf %2, %4 : vector<8x128xf32>
    %cst_5 = arith.constant 0.000000e+00 : f32
    %6 = vector.broadcast %cst_5 : f32 to vector<8x128xf32>
    %7 = arith.maximumf %5, %6 : vector<8x128xf32>
    %8 = arith.truncf %7 : vector<8x128xf32> to vector<8x128xbf16>
    %c0_6 = arith.constant 0 : index
    %c0_7 = arith.constant 0 : index
    %9 = vector.load %arg4[%c0_6, %c0_7] : memref<128x128xbf16, #tpu.memory_space<vmem>>, vector<128x128xbf16>
    %cst_8 = arith.constant dense<0.000000e+00> : vector<8x128xf32>
    %10 = tpu.matmul %8, %9, %cst_8 {dimension_numbers = #tpu.dot_dimension_numbers<[1], [0], [0], [1], [0, 0, 1, 1], [], []>} : vector<8x128xbf16>, vector<128x128xbf16>, vector<8x128xf32> -> vector<8x128xf32>
    %c0_9 = arith.constant 0 : index
    %c0_10 = arith.constant 0 : index
    %11 = vector.load %arg7[%c0_9, %c0_10] : memref<1x128xf32, #tpu.memory_space<vmem>>, vector<1x128xf32>
    %12 = vector.broadcast %11 : vector<1x128xf32> to vector<8x128xf32>
    %13 = arith.addf %10, %12 : vector<8x128xf32>
    %c0_11 = arith.constant 0 : index
    %c0_12 = arith.constant 0 : index
    %14 = vector.load %arg3[%c0_11, %c0_12] : memref<64x128xbf16, #tpu.memory_space<vmem>>, vector<64x128xbf16>
    %c0_13 = arith.constant 0 : index
    %c0_14 = arith.constant 0 : index
    %15 = vector.load %arg5[%c0_13, %c0_14] : memref<128x128xbf16, #tpu.memory_space<vmem>>, vector<128x128xbf16>
    %cst_15 = arith.constant dense<0.000000e+00> : vector<64x128xf32>
    %16 = tpu.matmul %14, %15, %cst_15 {dimension_numbers = #tpu.dot_dimension_numbers<[1], [0], [0], [1], [0, 0, 1, 1], [], []>} : vector<64x128xbf16>, vector<128x128xbf16>, vector<64x128xf32> -> vector<64x128xf32>
    %c0_16 = arith.constant 0 : index
    %c0_17 = arith.constant 0 : index
    %17 = vector.load %arg14[%c0_16, %c0_17] : memref<64x128xf32, #tpu.memory_space<vmem>>, vector<64x128xf32>
    tpu.vector_store %arg14[%c0_16, %c0_17], %16 {strides = array<i32>} : memref<64x128xf32, #tpu.memory_space<vmem>>, vector<64x128xf32>,
    %c0_18 = arith.constant 0 : index
    %c0_19 = arith.constant 0 : index
    %18 = vector.load %arg6[%c0_18, %c0_19] : memref<128x128xbf16, #tpu.memory_space<vmem>>, vector<128x128xbf16>
    %cst_20 = arith.constant 0.000000e+00 : bf16
    %19 = vector.broadcast %cst_20 : bf16 to vector<8x128xbf16>
    %c0_i32 = arith.constant 0 : i32
    %c8_i32 = arith.constant 8 : i32
    %20 = arith.muli %c0_i32, %c8_i32 : i32
    %21 = tpu.assume_multiple %20, 8 : i32
    %22 = arith.index_cast %21 : i32 to index
    %c0_21 = arith.constant 0 : index
    %23 = vector.load %arg14[%22, %c0_21] : memref<64x128xf32, #tpu.memory_space<vmem>>, vector<8x128xf32>
    %24 = arith.addf %23, %13 : vector<8x128xf32>
    %cst_22 = arith.constant dense<0.000000e+00> : vector<8x128xf32>
    %25 = tpu.matmul %19, %18, %cst_22 {dimension_numbers = #tpu.dot_dimension_numbers<[1], [0], [0], [1], [0, 0, 1, 1], [], []>} : vector<8x128xbf16>, vector<128x128xbf16>, vector<8x128xf32> -> vector<8x128xf32>
    %26 = arith.addf %24, %25 : vector<8x128xf32>
    %27 = math.tanh %26 : vector<8x128xf32>
    %28 = arith.index_cast %21 : i32 to index
    %c0_23 = arith.constant 0 : index
    %29 = vector.load %arg13[%28, %c0_23] : memref<64x128xf32, #tpu.memory_space<vmem>>, vector<8x128xf32>
    tpu.vector_store %arg13[%28, %c0_23], %27 {strides = array<i32>} : memref<64x128xf32, #tpu.memory_space<vmem>>, vector<8x128xf32>,
    %30 = arith.truncf %27 : vector<8x128xf32> to vector<8x128xbf16>
    %c1_i32 = arith.constant 1 : i32
    %c8_i32_24 = arith.constant 8 : i32
    %31 = arith.muli %c1_i32, %c8_i32_24 : i32
    %32 = tpu.assume_multiple %31, 8 : i32
    %33 = arith.index_cast %32 : i32 to index
    %c0_25 = arith.constant 0 : index
    %34 = vector.load %arg14[%33, %c0_25] : memref<64x128xf32, #tpu.memory_space<vmem>>, vector<8x128xf32>
    %35 = arith.addf %34, %13 : vector<8x128xf32>
    %cst_26 = arith.constant dense<0.000000e+00> : vector<8x128xf32>
    %36 = tpu.matmul %30, %18, %cst_26 {dimension_numbers = #tpu.dot_dimension_numbers<[1], [0], [0], [1], [0, 0, 1, 1], [], []>} : vector<8x128xbf16>, vector<128x128xbf16>, vector<8x128xf32> -> vector<8x128xf32>
    %37 = arith.addf %35, %36 : vector<8x128xf32>
    %38 = math.tanh %37 : vector<8x128xf32>
    %39 = arith.index_cast %32 : i32 to index
    %c0_27 = arith.constant 0 : index
    %40 = vector.load %arg13[%39, %c0_27] : memref<64x128xf32, #tpu.memory_space<vmem>>, vector<8x128xf32>
    tpu.vector_store %arg13[%39, %c0_27], %38 {strides = array<i32>} : memref<64x128xf32, #tpu.memory_space<vmem>>, vector<8x128xf32>,
    %41 = arith.truncf %38 : vector<8x128xf32> to vector<8x128xbf16>
    %c2_i32 = arith.constant 2 : i32
    %c8_i32_28 = arith.constant 8 : i32
    %42 = arith.muli %c2_i32, %c8_i32_28 : i32
    %43 = tpu.assume_multiple %42, 8 : i32
    %44 = arith.index_cast %43 : i32 to index
    %c0_29 = arith.constant 0 : index
    %45 = vector.load %arg14[%44, %c0_29] : memref<64x128xf32, #tpu.memory_space<vmem>>, vector<8x128xf32>
    %46 = arith.addf %45, %13 : vector<8x128xf32>
    %cst_30 = arith.constant dense<0.000000e+00> : vector<8x128xf32>
    %47 = tpu.matmul %41, %18, %cst_30 {dimension_numbers = #tpu.dot_dimension_numbers<[1], [0], [0], [1], [0, 0, 1, 1], [], []>} : vector<8x128xbf16>, vector<128x128xbf16>, vector<8x128xf32> -> vector<8x128xf32>
    %48 = arith.addf %46, %47 : vector<8x128xf32>
    %49 = math.tanh %48 : vector<8x128xf32>
    %50 = arith.index_cast %43 : i32 to index
    %c0_31 = arith.constant 0 : index
    %51 = vector.load %arg13[%50, %c0_31] : memref<64x128xf32, #tpu.memory_space<vmem>>, vector<8x128xf32>
    tpu.vector_store %arg13[%50, %c0_31], %49 {strides = array<i32>} : memref<64x128xf32, #tpu.memory_space<vmem>>, vector<8x128xf32>,
    %52 = arith.truncf %49 : vector<8x128xf32> to vector<8x128xbf16>
    %c3_i32 = arith.constant 3 : i32
    %c8_i32_32 = arith.constant 8 : i32
    %53 = arith.muli %c3_i32, %c8_i32_32 : i32
    %54 = tpu.assume_multiple %53, 8 : i32
    %55 = arith.index_cast %54 : i32 to index
    %c0_33 = arith.constant 0 : index
    %56 = vector.load %arg14[%55, %c0_33] : memref<64x128xf32, #tpu.memory_space<vmem>>, vector<8x128xf32>
    %57 = arith.addf %56, %13 : vector<8x128xf32>
    %cst_34 = arith.constant dense<0.000000e+00> : vector<8x128xf32>
    %58 = tpu.matmul %52, %18, %cst_34 {dimension_numbers = #tpu.dot_dimension_numbers<[1], [0], [0], [1], [0, 0, 1, 1], [], []>} : vector<8x128xbf16>, vector<128x128xbf16>, vector<8x128xf32> -> vector<8x128xf32>
    %59 = arith.addf %57, %58 : vector<8x128xf32>
    %60 = math.tanh %59 : vector<8x128xf32>
    %61 = arith.index_cast %54 : i32 to index
    %c0_35 = arith.constant 0 : index
    %62 = vector.load %arg13[%61, %c0_35] : memref<64x128xf32, #tpu.memory_space<vmem>>, vector<8x128xf32>
    tpu.vector_store %arg13[%61, %c0_35], %60 {strides = array<i32>} : memref<64x128xf32, #tpu.memory_space<vmem>>, vector<8x128xf32>,
    %63 = arith.truncf %60 : vector<8x128xf32> to vector<8x128xbf16>
    %c4_i32 = arith.constant 4 : i32
    %c8_i32_36 = arith.constant 8 : i32
    %64 = arith.muli %c4_i32, %c8_i32_36 : i32
    %65 = tpu.assume_multiple %64, 8 : i32
    %66 = arith.index_cast %65 : i32 to index
    %c0_37 = arith.constant 0 : index
    %67 = vector.load %arg14[%66, %c0_37] : memref<64x128xf32, #tpu.memory_space<vmem>>, vector<8x128xf32>
    %68 = arith.addf %67, %13 : vector<8x128xf32>
    %cst_38 = arith.constant dense<0.000000e+00> : vector<8x128xf32>
    %69 = tpu.matmul %63, %18, %cst_38 {dimension_numbers = #tpu.dot_dimension_numbers<[1], [0], [0], [1], [0, 0, 1, 1], [], []>} : vector<8x128xbf16>, vector<128x128xbf16>, vector<8x128xf32> -> vector<8x128xf32>
    %70 = arith.addf %68, %69 : vector<8x128xf32>
    %71 = math.tanh %70 : vector<8x128xf32>
    %72 = arith.index_cast %65 : i32 to index
    %c0_39 = arith.constant 0 : index
    %73 = vector.load %arg13[%72, %c0_39] : memref<64x128xf32, #tpu.memory_space<vmem>>, vector<8x128xf32>
    tpu.vector_store %arg13[%72, %c0_39], %71 {strides = array<i32>} : memref<64x128xf32, #tpu.memory_space<vmem>>, vector<8x128xf32>,
    %74 = arith.truncf %71 : vector<8x128xf32> to vector<8x128xbf16>
    %c5_i32 = arith.constant 5 : i32
    %c8_i32_40 = arith.constant 8 : i32
    %75 = arith.muli %c5_i32, %c8_i32_40 : i32
    %76 = tpu.assume_multiple %75, 8 : i32
    %77 = arith.index_cast %76 : i32 to index
    %c0_41 = arith.constant 0 : index
    %78 = vector.load %arg14[%77, %c0_41] : memref<64x128xf32, #tpu.memory_space<vmem>>, vector<8x128xf32>
    %79 = arith.addf %78, %13 : vector<8x128xf32>
    %cst_42 = arith.constant dense<0.000000e+00> : vector<8x128xf32>
    %80 = tpu.matmul %74, %18, %cst_42 {dimension_numbers = #tpu.dot_dimension_numbers<[1], [0], [0], [1], [0, 0, 1, 1], [], []>} : vector<8x128xbf16>, vector<128x128xbf16>, vector<8x128xf32> -> vector<8x128xf32>
    %81 = arith.addf %79, %80 : vector<8x128xf32>
    %82 = math.tanh %81 : vector<8x128xf32>
    %83 = arith.index_cast %76 : i32 to index
    %c0_43 = arith.constant 0 : index
    %84 = vector.load %arg13[%83, %c0_43] : memref<64x128xf32, #tpu.memory_space<vmem>>, vector<8x128xf32>
    tpu.vector_store %arg13[%83, %c0_43], %82 {strides = array<i32>} : memref<64x128xf32, #tpu.memory_space<vmem>>, vector<8x128xf32>,
    %85 = arith.truncf %82 : vector<8x128xf32> to vector<8x128xbf16>
    %c6_i32 = arith.constant 6 : i32
    %c8_i32_44 = arith.constant 8 : i32
    %86 = arith.muli %c6_i32, %c8_i32_44 : i32
    %87 = tpu.assume_multiple %86, 8 : i32
    %88 = arith.index_cast %87 : i32 to index
    %c0_45 = arith.constant 0 : index
    %89 = vector.load %arg14[%88, %c0_45] : memref<64x128xf32, #tpu.memory_space<vmem>>, vector<8x128xf32>
    %90 = arith.addf %89, %13 : vector<8x128xf32>
    %cst_46 = arith.constant dense<0.000000e+00> : vector<8x128xf32>
    %91 = tpu.matmul %85, %18, %cst_46 {dimension_numbers = #tpu.dot_dimension_numbers<[1], [0], [0], [1], [0, 0, 1, 1], [], []>} : vector<8x128xbf16>, vector<128x128xbf16>, vector<8x128xf32> -> vector<8x128xf32>
    %92 = arith.addf %90, %91 : vector<8x128xf32>
    %93 = math.tanh %92 : vector<8x128xf32>
    %94 = arith.index_cast %87 : i32 to index
    %c0_47 = arith.constant 0 : index
    %95 = vector.load %arg13[%94, %c0_47] : memref<64x128xf32, #tpu.memory_space<vmem>>, vector<8x128xf32>
    tpu.vector_store %arg13[%94, %c0_47], %93 {strides = array<i32>} : memref<64x128xf32, #tpu.memory_space<vmem>>, vector<8x128xf32>,
    %96 = arith.truncf %93 : vector<8x128xf32> to vector<8x128xbf16>
    %c7_i32 = arith.constant 7 : i32
    %c8_i32_48 = arith.constant 8 : i32
    %97 = arith.muli %c7_i32, %c8_i32_48 : i32
    %98 = tpu.assume_multiple %97, 8 : i32
    %99 = arith.index_cast %98 : i32 to index
    %c0_49 = arith.constant 0 : index
    %100 = vector.load %arg14[%99, %c0_49] : memref<64x128xf32, #tpu.memory_space<vmem>>, vector<8x128xf32>
    %101 = arith.addf %100, %13 : vector<8x128xf32>
    %cst_50 = arith.constant dense<0.000000e+00> : vector<8x128xf32>
    %102 = tpu.matmul %96, %18, %cst_50 {dimension_numbers = #tpu.dot_dimension_numbers<[1], [0], [0], [1], [0, 0, 1, 1], [], []>} : vector<8x128xbf16>, vector<128x128xbf16>, vector<8x128xf32> -> vector<8x128xf32>
    %103 = arith.addf %101, %102 : vector<8x128xf32>
    %104 = math.tanh %103 : vector<8x128xf32>
    %105 = arith.index_cast %98 : i32 to index
    %c0_51 = arith.constant 0 : index
    %106 = vector.load %arg13[%105, %c0_51] : memref<64x128xf32, #tpu.memory_space<vmem>>, vector<8x128xf32>
    tpu.vector_store %arg13[%105, %c0_51], %104 {strides = array<i32>} : memref<64x128xf32, #tpu.memory_space<vmem>>, vector<8x128xf32>,
    %107 = arith.truncf %104 : vector<8x128xf32> to vector<8x128xbf16>
    %c8_i32_52 = arith.constant 8 : i32
    %c0_53 = arith.constant 0 : index
    %c0_54 = arith.constant 0 : index
    %108 = vector.load %arg13[%c0_53, %c0_54] : memref<64x128xf32, #tpu.memory_space<vmem>>, vector<64x128xf32>
    %109 = arith.truncf %108 : vector<64x128xf32> to vector<64x128xbf16>
    %c0_55 = arith.constant 0 : index
    %c0_56 = arith.constant 0 : index
    %110 = vector.load %arg8[%c0_55, %c0_56] : memref<128x128xbf16, #tpu.memory_space<vmem>>, vector<128x128xbf16>
    %cst_57 = arith.constant dense<0.000000e+00> : vector<64x128xf32>
    %111 = tpu.matmul %109, %110, %cst_57 {dimension_numbers = #tpu.dot_dimension_numbers<[1], [0], [0], [1], [0, 0, 1, 1], [], []>} : vector<64x128xbf16>, vector<128x128xbf16>, vector<64x128xf32> -> vector<64x128xf32>
    %c0_58 = arith.constant 0 : index
    %c0_59 = arith.constant 0 : index
    %112 = vector.load %arg9[%c0_58, %c0_59] : memref<1x128xf32, #tpu.memory_space<vmem>>, vector<1x128xf32>
    %113 = vector.broadcast %112 : vector<1x128xf32> to vector<64x128xf32>
    %114 = arith.addf %111, %113 : vector<64x128xf32>
    %cst_60 = arith.constant 0.000000e+00 : f32
    %115 = vector.broadcast %cst_60 : f32 to vector<64x128xf32>
    %116 = arith.maximumf %114, %115 : vector<64x128xf32>
    %117 = arith.truncf %116 : vector<64x128xf32> to vector<64x128xbf16>
    %c0_61 = arith.constant 0 : index
    %c0_62 = arith.constant 0 : index
    %118 = vector.load %arg10[%c0_61, %c0_62] : memref<128x128xbf16, #tpu.memory_space<vmem>>, vector<128x128xbf16>
    %cst_63 = arith.constant dense<0.000000e+00> : vector<64x128xf32>
    %119 = tpu.matmul %117, %118, %cst_63 {dimension_numbers = #tpu.dot_dimension_numbers<[1], [0], [0], [1], [0, 0, 1, 1], [], []>} : vector<64x128xbf16>, vector<128x128xbf16>, vector<64x128xf32> -> vector<64x128xf32>
    %c0_64 = arith.constant 0 : index
    %c0_65 = arith.constant 0 : index
    %120 = vector.load %arg11[%c0_64, %c0_65] : memref<1x128xf32, #tpu.memory_space<vmem>>, vector<1x128xf32>
    %121 = vector.broadcast %120 : vector<1x128xf32> to vector<64x128xf32>
    %122 = arith.addf %119, %121 : vector<64x128xf32>
    %c0_66 = arith.constant 0 : index
    %c0_67 = arith.constant 0 : index
    %123 = vector.load %arg12[%c0_66, %c0_67] : memref<64x128xf32, #tpu.memory_space<vmem>>, vector<64x128xf32>
    tpu.vector_store %arg12[%c0_66, %c0_67], %122 {strides = array<i32>} : memref<64x128xf32, #tpu.memory_space<vmem>>, vector<64x128xf32>,
    return
  }
}

</mosaic_0001>

<llo_original>
// kernel: tpu_custom_call.1
$region0: #{tpu_custom_call.1}
  #allocation0 [shape = 'u32[]', space=smem, size = 0x4, offset = 0x4, fixed_abs, tag = 'smem constant byte address 0x4 - core index']
  #allocation1 [shape = 'u32[144,128]{1,0:T(1,128)}', space=vmem, size = 0x12000, scoped, tag = 'internal scratch']
  #allocation2 [shape = 'f32[64,128]{1,0:T(8,128)}', space=vmem, size = 0x8000, scoped, tag = 'scratch operand']
  #allocation3 [shape = 'f32[64,128]{1,0:T(8,128)}', space=vmem, size = 0x8000, scoped, tag = 'scratch operand']
  %s0 = inlined_call_operand.hbm [shape: bf16[8,128], index: 0, kind: input, shape index: {}]
  %s1 = inlined_call_operand.hbm [shape: bf16[128,128], index: 1, kind: input, shape index: {}]
  %s2 = inlined_call_operand.hbm [shape: f32[1,128], index: 2, kind: input, shape index: {}]
  %s3 = inlined_call_operand.hbm [shape: bf16[64,128], index: 3, kind: input, shape index: {}]
  %s4 = inlined_call_operand.hbm [shape: bf16[128,128], index: 4, kind: input, shape index: {}]
  %s5 = inlined_call_operand.hbm [shape: bf16[128,128], index: 5, kind: input, shape index: {}]
  %s6 = inlined_call_operand.hbm [shape: bf16[128,128], index: 6, kind: input, shape index: {}]
  %s7 = inlined_call_operand.hbm [shape: f32[1,128], index: 7, kind: input, shape index: {}]
  %s8 = inlined_call_operand.hbm [shape: bf16[128,128], index: 8, kind: input, shape index: {}]
  %s9 = inlined_call_operand.hbm [shape: f32[1,128], index: 9, kind: input, shape index: {}]
  %s10 = inlined_call_operand.hbm [shape: bf16[128,128], index: 10, kind: input, shape index: {}]
  %s11 = inlined_call_operand.hbm [shape: f32[1,128], index: 11, kind: input, shape index: {}]
  %s12 = inlined_call_operand.hbm [shape: f32[64,128], index: 12, kind: output, shape index: {}]
  %s13 = sld [smem:[#allocation0]]
  $region106: #{tpu_custom_call.1} parent=0
    _
  %s15 = ssub.s32 1, %s13
  %s16 = scalar_select 0, %s15, %s13
  $region1: #{tpu_custom_call.1} parent=0
    #allocation4 [shape = 'u8[2048]{0}', space=vmem, size = 0x800, scoped, tag = 'input window, operand 0, single buffered']
    #allocation5 [shape = 's32[1]{0}', space=sflag, size = 0x4, scoped, tag = 'scoped memory for tpu_custom_call.1']
    #allocation6 [shape = 's32[1]{0}', space=sflag, size = 0x4, scoped, tag = 'scoped memory for tpu_custom_call.1']
    #allocation7 [shape = 'u8[32768]{0}', space=vmem, size = 0x8000, scoped, tag = 'input window, operand 1, single buffered']
    #allocation8 [shape = 's32[1]{0}', space=sflag, size = 0x4, scoped, tag = 'scoped memory for tpu_custom_call.1']
    #allocation9 [shape = 'u8[512]{0}', space=vmem, size = 0x400, scoped, tag = 'input window, operand 2, single buffered']
    #allocation10 [shape = 'u8[16384]{0}', space=vmem, size = 0x4000, scoped, tag = 'input window, operand 3, single buffered']
    #allocation11 [shape = 's32[1]{0}', space=sflag, size = 0x4, scoped, tag = 'scoped memory for tpu_custom_call.1']
    #allocation12 [shape = 'u8[32768]{0}', space=vmem, size = 0x8000, scoped, tag = 'input window, operand 4, single buffered']
    #allocation13 [shape = 'u8[32768]{0}', space=vmem, size = 0x8000, scoped, tag = 'input window, operand 5, single buffered']
    #allocation14 [shape = 's32[1]{0}', space=sflag, size = 0x4, scoped, tag = 'scoped memory for tpu_custom_call.1']
    #allocation15 [shape = 'u8[32768]{0}', space=vmem, size = 0x8000, scoped, tag = 'input window, operand 6, single buffered']
    #allocation16 [shape = 'u8[512]{0}', space=vmem, size = 0x400, scoped, tag = 'input window, operand 7, single buffered']
    #allocation17 [shape = 's32[1]{0}', space=sflag, size = 0x4, scoped, tag = 'scoped memory for tpu_custom_call.1']
    #allocation18 [shape = 'u8[32768]{0}', space=vmem, size = 0x8000, scoped, tag = 'input window, operand 8, single buffered']
    #allocation19 [shape = 'u8[512]{0}', space=vmem, size = 0x400, scoped, tag = 'input window, operand 9, single buffered']
    #allocation20 [shape = 's32[1]{0}', space=sflag, size = 0x4, scoped, tag = 'scoped memory for tpu_custom_call.1']
    #allocation21 [shape = 'u8[32768]{0}', space=vmem, size = 0x8000, scoped, tag = 'input window, operand 10, single buffered']
    #allocation22 [shape = 'u8[512]{0}', space=vmem, size = 0x400, scoped, tag = 'input window, operand 11, single buffered']
    #allocation23 [shape = 's32[1]{0}', space=sflag, size = 0x4, scoped, tag = 'scoped memory for tpu_custom_call.1']
    #allocation24 [shape = 'u8[32768]{0}', space=vmem, size = 0x8000, scoped, tag = 'output window, operand 0, single buffered']
    %17 = vsyncpa [#allocation5], 0
    %18 = vsyncpa [#allocation8], 0
    %19 = vsyncpa [#allocation11], 0
    %20 = vsyncpa [#allocation14], 0
    %21 = vsyncpa [#allocation17], 0
    %22 = vsyncpa [#allocation20], 0
    %23 = vsyncpa [#allocation23], 0
    %24 = vsyncpa [#allocation6], 0
    // Predicated region
    $region2: #{tpu_custom_call.1} parent=1 // pred_check
      _
    $region3: #{tpu_custom_call.1} parent=1 // pred_check_branch
      %26 = sbr.rel (0) target = $region5
    $region4: #{tpu_custom_call.1} parent=1 // pred_region
      %s28 = ssub.s32 64, 64
      %29 = vsyncadd [#allocation5], %s28
      %s31 = sshll.u32 [#allocation4], 4
      %s32 = int_to_ptr.vmem [resolvable:$true] %s31
      %34 = dma.hbm_to_vmem [thread:$0]  %s0, 64, %s32, [#allocation5]
    $region5: #{tpu_custom_call.1} parent=1 // pred_fallthru
      _
    // Predicated region
    $region6: #{tpu_custom_call.1} parent=1 // pred_check
      _
    $region7: #{tpu_custom_call.1} parent=1 // pred_check_branch
      %36 = sbr.rel (0) target = $region9
    $region8: #{tpu_custom_call.1} parent=1 // pred_region
      %s38 = ssub.s32 1024, 1024
      %39 = vsyncadd [#allocation8], %s38
      %s40 = sshll.u32 [#allocation7], 4
      %s41 = int_to_ptr.vmem [resolvable:$true] %s40
      %46 = dma.hbm_to_vmem [thread:$0]  %s1, 1024, %s41, [#allocation8], 64, 64, 4
    $region9: #{tpu_custom_call.1} parent=1 // pred_fallthru
      _
    // Predicated region
    $region10: #{tpu_custom_call.1} parent=1 // pred_check
      _
    $region11: #{tpu_custom_call.1} parent=1 // pred_check_branch
      %48 = sbr.rel (0) target = $region13
    $region12: #{tpu_custom_call.1} parent=1 // pred_region
      %s50 = ssub.s32 16, 16
      %51 = vsyncadd [#allocation8], %s50
      %s53 = sshll.u32 [#allocation9], 4
      %s54 = int_to_ptr.vmem [resolvable:$true] %s53
      %56 = dma.hbm_to_vmem [thread:$0]  %s2, 16, %s54, [#allocation8]
    $region13: #{tpu_custom_call.1} parent=1 // pred_fallthru
      _
    // Predicated region
    $region14: #{tpu_custom_call.1} parent=1 // pred_check
      _
    $region15: #{tpu_custom_call.1} parent=1 // pred_check_branch
      %58 = sbr.rel (0) target = $region17
    $region16: #{tpu_custom_call.1} parent=1 // pred_region
      %s60 = ssub.s32 512, 512
      %61 = vsyncadd [#allocation11], %s60
      %s62 = sshll.u32 [#allocation10], 4
      %s63 = int_to_ptr.vmem [resolvable:$true] %s62
      %68 = dma.hbm_to_vmem [thread:$0]  %s3, 512, %s63, [#allocation11], 64, 64, 4
    $region17: #{tpu_custom_call.1} parent=1 // pred_fallthru
      _
    // Predicated region
    $region18: #{tpu_custom_call.1} parent=1 // pred_check
      _
    $region19: #{tpu_custom_call.1} parent=1 // pred_check_branch
      %70 = sbr.rel (0) target = $region21
    $region20: #{tpu_custom_call.1} parent=1 // pred_region
      %s72 = ssub.s32 1024, 1024
      %73 = vsyncadd [#allocation11], %s72
      %s74 = sshll.u32 [#allocation12], 4
      %s75 = int_to_ptr.vmem [resolvable:$true] %s74
      %80 = dma.hbm_to_vmem [thread:$0]  %s4, 1024, %s75, [#allocation11], 64, 64, 4
    $region21: #{tpu_custom_call.1} parent=1 // pred_fallthru
      _
    // Predicated region
    $region22: #{tpu_custom_call.1} parent=1 // pred_check
      _
    $region23: #{tpu_custom_call.1} parent=1 // pred_check_branch
      %82 = sbr.rel (0) target = $region25
    $region24: #{tpu_custom_call.1} parent=1 // pred_region
      %s84 = ssub.s32 1024, 1024
      %85 = vsyncadd [#allocation14], %s84
      %s86 = sshll.u32 [#allocation13], 4
      %s87 = int_to_ptr.vmem [resolvable:$true] %s86
      %92 = dma.hbm_to_vmem [thread:$0]  %s5, 1024, %s87, [#allocation14], 64, 64, 4
    $region25: #{tpu_custom_call.1} parent=1 // pred_fallthru
      _
    // Predicated region
    $region26: #{tpu_custom_call.1} parent=1 // pred_check
      _
    $region27: #{tpu_custom_call.1} parent=1 // pred_check_branch
      %94 = sbr.rel (0) target = $region29
    $region28: #{tpu_custom_call.1} parent=1 // pred_region
      %s96 = ssub.s32 1024, 1024
      %97 = vsyncadd [#allocation14], %s96
      %s98 = sshll.u32 [#allocation15], 4
      %s99 = int_to_ptr.vmem [resolvable:$true] %s98
      %104 = dma.hbm_to_vmem [thread:$0]  %s6, 1024, %s99, [#allocation14], 64, 64, 4
    $region29: #{tpu_custom_call.1} parent=1 // pred_fallthru
      _
    // Predicated region
    $region30: #{tpu_custom_call.1} parent=1 // pred_check
      _
    $region31: #{tpu_custom_call.1} parent=1 // pred_check_branch
      %106 = sbr.rel (0) target = $region33
    $region32: #{tpu_custom_call.1} parent=1 // pred_region
      %s108 = ssub.s32 16, 16
      %109 = vsyncadd [#allocation17], %s108
      %s111 = sshll.u32 [#allocation16], 4
      %s112 = int_to_ptr.vmem [resolvable:$true] %s111
      %114 = dma.hbm_to_vmem [thread:$0]  %s7, 16, %s112, [#allocation17]
    $region33: #{tpu_custom_call.1} parent=1 // pred_fallthru
      _
    // Predicated region
    $region34: #{tpu_custom_call.1} parent=1 // pred_check
      _
    $region35: #{tpu_custom_call.1} parent=1 // pred_check_branch
      %116 = sbr.rel (0) target = $region37
    $region36: #{tpu_custom_call.1} parent=1 // pred_region
      %s118 = ssub.s32 1024, 1024
      %119 = vsyncadd [#allocation17], %s118
      %s120 = sshll.u32 [#allocation18], 4
      %s121 = int_to_ptr.vmem [resolvable:$true] %s120
      %126 = dma.hbm_to_vmem [thread:$0]  %s8, 1024, %s121, [#allocation17], 64, 64, 4
    $region37: #{tpu_custom_call.1} parent=1 // pred_fallthru
      _
    // Predicated region
    $region38: #{tpu_custom_call.1} parent=1 // pred_check
      _
    $region39: #{tpu_custom_call.1} parent=1 // pred_check_branch
      %128 = sbr.rel (0) target = $region41
    $region40: #{tpu_custom_call.1} parent=1 // pred_region
      %s130 = ssub.s32 16, 16
      %131 = vsyncadd [#allocation20], %s130
      %s133 = sshll.u32 [#allocation19], 4
      %s134 = int_to_ptr.vmem [resolvable:$true] %s133
      %136 = dma.hbm_to_vmem [thread:$0]  %s9, 16, %s134, [#allocation20]
    $region41: #{tpu_custom_call.1} parent=1 // pred_fallthru
      _
    // Predicated region
    $region42: #{tpu_custom_call.1} parent=1 // pred_check
      _
    $region43: #{tpu_custom_call.1} parent=1 // pred_check_branch
      %138 = sbr.rel (0) target = $region45
    $region44: #{tpu_custom_call.1} parent=1 // pred_region
      %s140 = ssub.s32 1024, 1024
      %141 = vsyncadd [#allocation20], %s140
      %s142 = sshll.u32 [#allocation21], 4
      %s143 = int_to_ptr.vmem [resolvable:$true] %s142
      %148 = dma.hbm_to_vmem [thread:$0]  %s10, 1024, %s143, [#allocation20], 64, 64, 4
    $region45: #{tpu_custom_call.1} parent=1 // pred_fallthru
      _
    // Predicated region
    $region46: #{tpu_custom_call.1} parent=1 // pred_check
      _
    $region47: #{tpu_custom_call.1} parent=1 // pred_check_branch
      %150 = sbr.rel (0) target = $region49
    $region48: #{tpu_custom_call.1} parent=1 // pred_region
      %s152 = ssub.s32 16, 16
      %153 = vsyncadd [#allocation23], %s152
      %s155 = sshll.u32 [#allocation22], 4
      %s156 = int_to_ptr.vmem [resolvable:$true] %s155
      %158 = dma.hbm_to_vmem [thread:$0]  %s11, 16, %s156, [#allocation23]
    $region49: #{tpu_custom_call.1} parent=1 // pred_fallthru
      _
    // Predicated region
    $region50: #{tpu_custom_call.1} parent=1 // pred_check
      _
    $region51: #{tpu_custom_call.1} parent=1 // pred_check_branch
      %160 = sbr.rel (0) target = $region53
    $region52: #{tpu_custom_call.1} parent=1 // pred_region
      %161 = dma.done [#allocation5], 64
    $region53: #{tpu_custom_call.1} parent=1 // pred_fallthru
      _
    // Predicated region
    $region54: #{tpu_custom_call.1} parent=1 // pred_check
      _
    $region55: #{tpu_custom_call.1} parent=1 // pred_check_branch
      %163 = sbr.rel (0) target = $region57
    $region56: #{tpu_custom_call.1} parent=1 // pred_region
      %164 = dma.done [#allocation8], 1024
    $region57: #{tpu_custom_call.1} parent=1 // pred_fallthru
      _
    // Predicated region
    $region58: #{tpu_custom_call.1} parent=1 // pred_check
      _
    $region59: #{tpu_custom_call.1} parent=1 // pred_check_branch
      %166 = sbr.rel (0) target = $region61
    $region60: #{tpu_custom_call.1} parent=1 // pred_region
      %167 = dma.done [#allocation8], 16
    $region61: #{tpu_custom_call.1} parent=1 // pred_fallthru
      _
    // Predicated region
    $region62: #{tpu_custom_call.1} parent=1 // pred_check
      _
    $region63: #{tpu_custom_call.1} parent=1 // pred_check_branch
      %169 = sbr.rel (0) target = $region65
    $region64: #{tpu_custom_call.1} parent=1 // pred_region
      %170 = dma.done [#allocation11], 512
    $region65: #{tpu_custom_call.1} parent=1 // pred_fallthru
      _
    // Predicated region
    $region66: #{tpu_custom_call.1} parent=1 // pred_check
      _
    $region67: #{tpu_custom_call.1} parent=1 // pred_check_branch
      %172 = sbr.rel (0) target = $region69
    $region68: #{tpu_custom_call.1} parent=1 // pred_region
      %173 = dma.done [#allocation11], 1024
    $region69: #{tpu_custom_call.1} parent=1 // pred_fallthru
      _
    // Predicated region
    $region70: #{tpu_custom_call.1} parent=1 // pred_check
      _
    $region71: #{tpu_custom_call.1} parent=1 // pred_check_branch
      %175 = sbr.rel (0) target = $region73
    $region72: #{tpu_custom_call.1} parent=1 // pred_region
      %176 = dma.done [#allocation14], 1024
    $region73: #{tpu_custom_call.1} parent=1 // pred_fallthru
      _
    // Predicated region
    $region74: #{tpu_custom_call.1} parent=1 // pred_check
      _
    $region75: #{tpu_custom_call.1} parent=1 // pred_check_branch
      %178 = sbr.rel (0) target = $region77
    $region76: #{tpu_custom_call.1} parent=1 // pred_region
      %179 = dma.done [#allocation14], 1024
    $region77: #{tpu_custom_call.1} parent=1 // pred_fallthru
      _
    // Predicated region
    $region78: #{tpu_custom_call.1} parent=1 // pred_check
      _
    $region79: #{tpu_custom_call.1} parent=1 // pred_check_branch
      %181 = sbr.rel (0) target = $region81
    $region80: #{tpu_custom_call.1} parent=1 // pred_region
      %182 = dma.done [#allocation17], 16
    $region81: #{tpu_custom_call.1} parent=1 // pred_fallthru
      _
    // Predicated region
    $region82: #{tpu_custom_call.1} parent=1 // pred_check
      _
    $region83: #{tpu_custom_call.1} parent=1 // pred_check_branch
      %184 = sbr.rel (0) target = $region85
    $region84: #{tpu_custom_call.1} parent=1 // pred_region
      %185 = dma.done [#allocation17], 1024
    $region85: #{tpu_custom_call.1} parent=1 // pred_fallthru
      _
    // Predicated region
    $region86: #{tpu_custom_call.1} parent=1 // pred_check
      _
    $region87: #{tpu_custom_call.1} parent=1 // pred_check_branch
      %187 = sbr.rel (0) target = $region89
    $region88: #{tpu_custom_call.1} parent=1 // pred_region
      %188 = dma.done [#allocation20], 16
    $region89: #{tpu_custom_call.1} parent=1 // pred_fallthru
      _
    // Predicated region
    $region90: #{tpu_custom_call.1} parent=1 // pred_check
      _
    $region91: #{tpu_custom_call.1} parent=1 // pred_check_branch
      %190 = sbr.rel (0) target = $region93
    $region92: #{tpu_custom_call.1} parent=1 // pred_region
      %191 = dma.done [#allocation20], 1024
    $region93: #{tpu_custom_call.1} parent=1 // pred_fallthru
      _
    // Predicated region
    $region94: #{tpu_custom_call.1} parent=1 // pred_check
      _
    $region95: #{tpu_custom_call.1} parent=1 // pred_check_branch
      %193 = sbr.rel (0) target = $region97
    $region96: #{tpu_custom_call.1} parent=1 // pred_region
      %194 = dma.done [#allocation23], 16
    $region97: #{tpu_custom_call.1} parent=1 // pred_fallthru
      _
    %v196 = vld [vmem:[#allocation4] sm:$0xf]
    %v197 = vld [vmem:[#allocation7] sm:$0xf]
    %v198 = vld [vmem:[#allocation7 + $0x4] sm:$0xf]
    %v199 = vld [vmem:[#allocation7 + $0x8] sm:$0xf]
    %v200 = vld [vmem:[#allocation7 + $0xc] sm:$0xf]
    %v201 = vld [vmem:[#allocation7 + $0x10] sm:$0xf]
    %v202 = vld [vmem:[#allocation7 + $0x14] sm:$0xf]
    %v203 = vld [vmem:[#allocation7 + $0x18] sm:$0xf]
    %v204 = vld [vmem:[#allocation7 + $0x1c] sm:$0xf]
    %v205 = vld [vmem:[#allocation7 + $0x20] sm:$0xf]
    %v206 = vld [vmem:[#allocation7 + $0x24] sm:$0xf]
    %v207 = vld [vmem:[#allocation7 + $0x28] sm:$0xf]
    %v208 = vld [vmem:[#allocation7 + $0x2c] sm:$0xf]
    %v209 = vld [vmem:[#allocation7 + $0x30] sm:$0xf]
    %v210 = vld [vmem:[#allocation7 + $0x34] sm:$0xf]
    %v211 = vld [vmem:[#allocation7 + $0x38] sm:$0xf]
    %v212 = vld [vmem:[#allocation7 + $0x3c] sm:$0xf]
    %v213 = vld [vmem:[#allocation9] sm:$0x1]
    %v215 = vlaneseq
    %v216 = vshrl.u32 %v215, 7
    %v217 = vsub.s32 0, %v216
    %v218 = vrot.slane %v213, %v217
    %v236 = vunpack.c.l.b16 %v197
    %v237 = vunpack.c.l.b16 %v198
    %v238 = vunpack.c.l.b16 %v199
    %v239 = vunpack.c.l.b16 %v200
    %v240 = vunpack.c.l.b16 %v201
    %v241 = vunpack.c.l.b16 %v202
    %v242 = vunpack.c.l.b16 %v203
    %v243 = vunpack.c.l.b16 %v204
    %v244 = vunpack.c.l.b16 %v205
    %v245 = vunpack.c.l.b16 %v206
    %v246 = vunpack.c.l.b16 %v207
    %v247 = vunpack.c.l.b16 %v208
    %v248 = vunpack.c.l.b16 %v209
    %v249 = vunpack.c.l.b16 %v210
    %v250 = vunpack.c.l.b16 %v211
    %v251 = vunpack.c.l.b16 %v212
    %v252 = vpack.c.b16 %v237, %v236
    %v253 = vpack.c.b16 %v239, %v238
    %v254 = vpack.c.b16 %v241, %v240
    %v255 = vpack.c.b16 %v243, %v242
    %v256 = vpack.c.b16 %v245, %v244
    %v257 = vpack.c.b16 %v247, %v246
    %v258 = vpack.c.b16 %v249, %v248
    %v259 = vpack.c.b16 %v251, %v250
    %268 = vmatprep.subr.bf16.mxu0 0
    %269 = vmatpush1.bf16.msra.mxu0 %v252
    %270 = vmatprep.subr.bf16.mxu0 0
    %271 = vmatpush1.bf16.msra.mxu0 %v253
    %272 = vmatprep.subr.bf16.mxu0 0
    %273 = vmatpush1.bf16.msra.mxu0 %v254
    %274 = vmatprep.subr.bf16.mxu0 0
    %275 = vmatpush1.bf16.msra.mxu0 %v255
    %276 = vmatprep.subr.bf16.mxu0 0
    %277 = vmatpush1.bf16.msra.mxu0 %v256
    %278 = vmatprep.subr.bf16.mxu0 0
    %279 = vmatpush1.bf16.msra.mxu0 %v257
    %280 = vmatprep.subr.bf16.mxu0 0
    %281 = vmatpush1.bf16.msra.mxu0 %v258
    %282 = vmatprep.subr.bf16.mxu0 0
    %283 = vmatpush1.bf16.msra.mxu0 %v259
    %284 = vmatprep.subr.bf16.mxu0 0
    %285 = vmatpush1.bf16.msra.mxu0 0
    %286 = vmatprep.subr.bf16.mxu0 0
    %287 = vmatpush1.bf16.msra.mxu0 0
    %288 = vmatprep.subr.bf16.mxu0 0
    %289 = vmatpush1.bf16.msra.mxu0 0
    %290 = vmatprep.subr.bf16.mxu0 0
    %291 = vmatpush1.bf16.msra.mxu0 0
    %292 = vmatprep.subr.bf16.mxu0 0
    %293 = vmatpush1.bf16.msra.mxu0 0
    %294 = vmatprep.subr.bf16.mxu0 0
    %295 = vmatpush1.bf16.msra.mxu0 0
    %296 = vmatprep.subr.bf16.mxu0 0
    %297 = vmatpush1.bf16.msra.mxu0 0
    %298 = vmatprep.subr.bf16.mxu0 0
    %299 = vmatpush1.bf16.msra.mxu0 0
    %300 = vmatprep.mubr.bf16.mxu0 0
    %301 = vmatmul.mubr.bf16.gmra.mrb[0].mxu0 %v196
    %v302 = vpop.f32.mrb[0].mxu0
    %v303 = vadd.f32 %v218, %v302
    %v304 = vpop.f32.mrb[0].mxu0
    %v305 = vpop.f32.mrb[0].mxu0
    %v306 = vpop.f32.mrb[0].mxu0
    %307 = vdwg.mxu0
    %v308 = vmax.f32 %v303, 0.0
    %v309 = vpack.c.bf16 %v308, %v308
    %v310 = vld [vmem:[#allocation12] sm:$0xf]
    %v311 = vld [vmem:[#allocation12 + $0x4] sm:$0xf]
    %v312 = vld [vmem:[#allocation12 + $0x8] sm:$0xf]
    %v313 = vld [vmem:[#allocation12 + $0xc] sm:$0xf]
    %v314 = vld [vmem:[#allocation12 + $0x10] sm:$0xf]
    %v315 = vld [vmem:[#allocation12 + $0x14] sm:$0xf]
    %v316 = vld [vmem:[#allocation12 + $0x18] sm:$0xf]
    %v317 = vld [vmem:[#allocation12 + $0x1c] sm:$0xf]
    %v318 = vld [vmem:[#allocation12 + $0x20] sm:$0xf]
    %v319 = vld [vmem:[#allocation12 + $0x24] sm:$0xf]
    %v320 = vld [vmem:[#allocation12 + $0x28] sm:$0xf]
    %v321 = vld [vmem:[#allocation12 + $0x2c] sm:$0xf]
    %v322 = vld [vmem:[#allocation12 + $0x30] sm:$0xf]
    %v323 = vld [vmem:[#allocation12 + $0x34] sm:$0xf]
    %v324 = vld [vmem:[#allocation12 + $0x38] sm:$0xf]
    %v325 = vld [vmem:[#allocation12 + $0x3c] sm:$0xf]
    %v326 = vld [vmem:[#allocation16] sm:$0x1]
    %v328 = vlaneseq
    %v329 = vshrl.u32 %v328, 7
    %v330 = vsub.s32 0, %v329
    %v331 = vrot.slane %v326, %v330
    %v349 = vunpack.c.l.b16 %v310
    %v350 = vunpack.c.l.b16 %v311
    %v351 = vunpack.c.l.b16 %v312
    %v352 = vunpack.c.l.b16 %v313
    %v353 = vunpack.c.l.b16 %v314
    %v354 = vunpack.c.l.b16 %v315
    %v355 = vunpack.c.l.b16 %v316
    %v356 = vunpack.c.l.b16 %v317
    %v357 = vunpack.c.l.b16 %v318
    %v358 = vunpack.c.l.b16 %v319
    %v359 = vunpack.c.l.b16 %v320
    %v360 = vunpack.c.l.b16 %v321
    %v361 = vunpack.c.l.b16 %v322
    %v362 = vunpack.c.l.b16 %v323
    %v363 = vunpack.c.l.b16 %v324
    %v364 = vunpack.c.l.b16 %v325
    %v365 = vpack.c.b16 %v350, %v349
    %v366 = vpack.c.b16 %v352, %v351
    %v367 = vpack.c.b16 %v354, %v353
    %v368 = vpack.c.b16 %v356, %v355
    %v369 = vpack.c.b16 %v358, %v357
    %v370 = vpack.c.b16 %v360, %v359
    %v371 = vpack.c.b16 %v362, %v361
    %v372 = vpack.c.b16 %v364, %v363
    %381 = vmatprep.subr.bf16.mxu0 0
    %382 = vmatpush1.bf16.msra.mxu0 %v365
    %383 = vmatprep.subr.bf16.mxu0 0
    %384 = vmatpush1.bf16.msra.mxu0 %v366
    %385 = vmatprep.subr.bf16.mxu0 0
    %386 = vmatpush1.bf16.msra.mxu0 %v367
    %387 = vmatprep.subr.bf16.mxu0 0
    %388 = vmatpush1.bf16.msra.mxu0 %v368
    %389 = vmatprep.subr.bf16.mxu0 0
    %390 = vmatpush1.bf16.msra.mxu0 %v369
    %391 = vmatprep.subr.bf16.mxu0 0
    %392 = vmatpush1.bf16.msra.mxu0 %v370
    %393 = vmatprep.subr.bf16.mxu0 0
    %394 = vmatpush1.bf16.msra.mxu0 %v371
    %395 = vmatprep.subr.bf16.mxu0 0
    %396 = vmatpush1.bf16.msra.mxu0 %v372
    %397 = vmatprep.subr.bf16.mxu0 0
    %398 = vmatpush1.bf16.msra.mxu0 0
    %399 = vmatprep.subr.bf16.mxu0 0
    %400 = vmatpush1.bf16.msra.mxu0 0
    %401 = vmatprep.subr.bf16.mxu0 0
    %402 = vmatpush1.bf16.msra.mxu0 0
    %403 = vmatprep.subr.bf16.mxu0 0
    %404 = vmatpush1.bf16.msra.mxu0 0
    %405 = vmatprep.subr.bf16.mxu0 0
    %406 = vmatpush1.bf16.msra.mxu0 0
    %407 = vmatprep.subr.bf16.mxu0 0
    %408 = vmatpush1.bf16.msra.mxu0 0
    %409 = vmatprep.subr.bf16.mxu0 0
    %410 = vmatpush1.bf16.msra.mxu0 0
    %411 = vmatprep.subr.bf16.mxu0 0
    %412 = vmatpush1.bf16.msra.mxu0 0
    %413 = vmatprep.mubr.bf16.mxu0 0
    %414 = vmatmul.mubr.bf16.gmra.mrb[0].mxu0 %v309
    %v415 = vpop.f32.mrb[0].mxu0
    %v416 = vadd.f32 %v331, %v415
    %v417 = vpop.f32.mrb[0].mxu0
    %v418 = vpop.f32.mrb[0].mxu0
    %v419 = vpop.f32.mrb[0].mxu0
    %420 = vdwg.mxu0
    %v421 = vld [vmem:[#allocation10] sm:$0xf]
    %v422 = vld [vmem:[#allocation10 + $0x4] sm:$0xf]
    %v423 = vld [vmem:[#allocation10 + $0x8] sm:$0xf]
    %v424 = vld [vmem:[#allocation10 + $0xc] sm:$0xf]
    %v425 = vld [vmem:[#allocation10 + $0x10] sm:$0xf]
    %v426 = vld [vmem:[#allocation10 + $0x14] sm:$0xf]
    %v427 = vld [vmem:[#allocation10 + $0x18] sm:$0xf]
    %v428 = vld [vmem:[#allocation10 + $0x1c] sm:$0xf]
    %v429 = vld [vmem:[#allocation13] sm:$0xf]
    %v430 = vld [vmem:[#allocation13 + $0x4] sm:$0xf]
    %v431 = vld [vmem:[#allocation13 + $0x8] sm:$0xf]
    %v432 = vld [vmem:[#allocation13 + $0xc] sm:$0xf]
    %v433 = vld [vmem:[#allocation13 + $0x10] sm:$0xf]
    %v434 = vld [vmem:[#allocation13 + $0x14] sm:$0xf]
    %v435 = vld [vmem:[#allocation13 + $0x18] sm:$0xf]
    %v436 = vld [vmem:[#allocation13 + $0x1c] sm:$0xf]
    %v437 = vld [vmem:[#allocation13 + $0x20] sm:$0xf]
    %v438 = vld [vmem:[#allocation13 + $0x24] sm:$0xf]
    %v439 = vld [vmem:[#allocation13 + $0x28] sm:$0xf]
    %v440 = vld [vmem:[#allocation13 + $0x2c] sm:$0xf]
    %v441 = vld [vmem:[#allocation13 + $0x30] sm:$0xf]
    %v442 = vld [vmem:[#allocation13 + $0x34] sm:$0xf]
    %v443 = vld [vmem:[#allocation13 + $0x38] sm:$0xf]
    %v444 = vld [vmem:[#allocation13 + $0x3c] sm:$0xf]
    %v453 = vunpack.c.l.b16 %v421
    %v454 = vunpack.c.l.b16 %v422
    %v455 = vunpack.c.l.b16 %v423
    %v456 = vunpack.c.l.b16 %v424
    %v457 = vunpack.c.l.b16 %v425
    %v458 = vunpack.c.l.b16 %v426
    %v459 = vunpack.c.l.b16 %v427
    %v460 = vunpack.c.l.b16 %v428
    %v461 = vpack.c.b16 %v454, %v453
    %v462 = vpack.c.b16 %v456, %v455
    %v463 = vpack.c.b16 %v458, %v457
    %v464 = vpack.c.b16 %v460, %v459
    %v485 = vunpack.c.l.b16 %v429
    %v486 = vunpack.c.l.b16 %v430
    %v487 = vunpack.c.l.b16 %v431
    %v488 = vunpack.c.l.b16 %v432
    %v489 = vunpack.c.l.b16 %v433
    %v490 = vunpack.c.l.b16 %v434
    %v491 = vunpack.c.l.b16 %v435
    %v492 = vunpack.c.l.b16 %v436
    %v493 = vunpack.c.l.b16 %v437
    %v494 = vunpack.c.l.b16 %v438
    %v495 = vunpack.c.l.b16 %v439
    %v496 = vunpack.c.l.b16 %v440
    %v497 = vunpack.c.l.b16 %v441
    %v498 = vunpack.c.l.b16 %v442
    %v499 = vunpack.c.l.b16 %v443
    %v500 = vunpack.c.l.b16 %v444
    %v501 = vpack.c.b16 %v486, %v485
    %v502 = vpack.c.b16 %v488, %v487
    %v503 = vpack.c.b16 %v490, %v489
    %v504 = vpack.c.b16 %v492, %v491
    %v505 = vpack.c.b16 %v494, %v493
    %v506 = vpack.c.b16 %v496, %v495
    %v507 = vpack.c.b16 %v498, %v497
    %v508 = vpack.c.b16 %v500, %v499
    %517 = vmatprep.subr.bf16.mxu0 0
    %518 = vmatpush1.bf16.msra.mxu0 %v501
    %519 = vmatprep.subr.bf16.mxu0 0
    %520 = vmatpush1.bf16.msra.mxu0 %v502
    %521 = vmatprep.subr.bf16.mxu0 0
    %522 = vmatpush1.bf16.msra.mxu0 %v503
    %523 = vmatprep.subr.bf16.mxu0 0
    %524 = vmatpush1.bf16.msra.mxu0 %v504
    %525 = vmatprep.subr.bf16.mxu0 0
    %526 = vmatpush1.bf16.msra.mxu0 %v505
    %527 = vmatprep.subr.bf16.mxu0 0
    %528 = vmatpush1.bf16.msra.mxu0 %v506
    %529 = vmatprep.subr.bf16.mxu0 0
    %530 = vmatpush1.bf16.msra.mxu0 %v507
    %531 = vmatprep.subr.bf16.mxu0 0
    %532 = vmatpush1.bf16.msra.mxu0 %v508
    %533 = vmatprep.subr.bf16.mxu0 0
    %534 = vmatpush1.bf16.msra.mxu0 0
    %535 = vmatprep.subr.bf16.mxu0 0
    %536 = vmatpush1.bf16.msra.mxu0 0
    %537 = vmatprep.subr.bf16.mxu0 0
    %538 = vmatpush1.bf16.msra.mxu0 0
    %539 = vmatprep.subr.bf16.mxu0 0
    %540 = vmatpush1.bf16.msra.mxu0 0
    %541 = vmatprep.subr.bf16.mxu0 0
    %542 = vmatpush1.bf16.msra.mxu0 0
    %543 = vmatprep.subr.bf16.mxu0 0
    %544 = vmatpush1.bf16.msra.mxu0 0
    %545 = vmatprep.subr.bf16.mxu0 0
    %546 = vmatpush1.bf16.msra.mxu0 0
    %547 = vmatprep.subr.bf16.mxu0 0
    %548 = vmatpush1.bf16.msra.mxu0 0
    %549 = vmatprep.mubr.bf16.mxu0 0
    %550 = vmatmul.mubr.bf16.gmra.mrb[0].mxu0 %v461
    %v551 = vpop.f32.mrb[0].mxu0
    %v552 = vadd.f32 0.0, %v551
    %v553 = vpop.f32.mrb[0].mxu0
    %v554 = vpop.f32.mrb[0].mxu0
    %v555 = vadd.f32 0.0, %v554
    %v556 = vpop.f32.mrb[0].mxu0
    %557 = vmatprep.mubr.bf16.mxu0 0
    %558 = vmatmul.mubr.bf16.gmra.mrb[0].mxu0 %v462
    %v559 = vpop.f32.mrb[0].mxu0
    %v560 = vadd.f32 0.0, %v559
    %v561 = vpop.f32.mrb[0].mxu0
    %v562 = vpop.f32.mrb[0].mxu0
    %v563 = vadd.f32 0.0, %v562
    %v564 = vpop.f32.mrb[0].mxu0
    %565 = vmatprep.mubr.bf16.mxu0 0
    %566 = vmatmul.mubr.bf16.gmra.mrb[0].mxu0 %v463
    %v567 = vpop.f32.mrb[0].mxu0
    %v568 = vadd.f32 0.0, %v567
    %v569 = vpop.f32.mrb[0].mxu0
    %v570 = vpop.f32.mrb[0].mxu0
    %v571 = vadd.f32 0.0, %v570
    %v572 = vpop.f32.mrb[0].mxu0
    %573 = vmatprep.mubr.bf16.mxu0 0
    %574 = vmatmul.mubr.bf16.gmra.mrb[0].mxu0 %v464
    %v575 = vpop.f32.mrb[0].mxu0
    %v576 = vadd.f32 0.0, %v575
    %v577 = vpop.f32.mrb[0].mxu0
    %v578 = vpop.f32.mrb[0].mxu0
    %v579 = vadd.f32 0.0, %v578
    %v580 = vpop.f32.mrb[0].mxu0
    %581 = vdwg.mxu0
    %582 = vst [vmem:[#allocation3] sm:$0xff] %v552
    %583 = vst [vmem:[#allocation3 + $0x8] sm:$0xff] %v555
    %584 = vst [vmem:[#allocation3 + $0x10] sm:$0xff] %v560
    %585 = vst [vmem:[#allocation3 + $0x18] sm:$0xff] %v563
    %586 = vst [vmem:[#allocation3 + $0x20] sm:$0xff] %v568
    %587 = vst [vmem:[#allocation3 + $0x28] sm:$0xff] %v571
    %588 = vst [vmem:[#allocation3 + $0x30] sm:$0xff] %v576
    %589 = vst [vmem:[#allocation3 + $0x38] sm:$0xff] %v579
    %v590 = vld [vmem:[#allocation15] sm:$0xf]
    %v591 = vld [vmem:[#allocation15 + $0x4] sm:$0xf]
    %v592 = vld [vmem:[#allocation15 + $0x8] sm:$0xf]
    %v593 = vld [vmem:[#allocation15 + $0xc] sm:$0xf]
    %v594 = vld [vmem:[#allocation15 + $0x10] sm:$0xf]
    %v595 = vld [vmem:[#allocation15 + $0x14] sm:$0xf]
    %v596 = vld [vmem:[#allocation15 + $0x18] sm:$0xf]
    %v597 = vld [vmem:[#allocation15 + $0x1c] sm:$0xf]
    %v598 = vld [vmem:[#allocation15 + $0x20] sm:$0xf]
    %v599 = vld [vmem:[#allocation15 + $0x24] sm:$0xf]
    %v600 = vld [vmem:[#allocation15 + $0x28] sm:$0xf]
    %v601 = vld [vmem:[#allocation15 + $0x2c] sm:$0xf]
    %v602 = vld [vmem:[#allocation15 + $0x30] sm:$0xf]
    %v603 = vld [vmem:[#allocation15 + $0x34] sm:$0xf]
    %v604 = vld [vmem:[#allocation15 + $0x38] sm:$0xf]
    %v605 = vld [vmem:[#allocation15 + $0x3c] sm:$0xf]
    %v606 = vld [vmem:[#allocation3] sm:$0xff]
    %v607 = vadd.f32 %v606, %v416
    %v624 = vunpack.c.l.b16 %v590
    %v625 = vunpack.c.l.b16 %v591
    %v626 = vunpack.c.l.b16 %v592
    %v627 = vunpack.c.l.b16 %v593
    %v628 = vunpack.c.l.b16 %v594
    %v629 = vunpack.c.l.b16 %v595
    %v630 = vunpack.c.l.b16 %v596
    %v631 = vunpack.c.l.b16 %v597
    %v632 = vunpack.c.l.b16 %v598
    %v633 = vunpack.c.l.b16 %v599
    %v634 = vunpack.c.l.b16 %v600
    %v635 = vunpack.c.l.b16 %v601
    %v636 = vunpack.c.l.b16 %v602
    %v637 = vunpack.c.l.b16 %v603
    %v638 = vunpack.c.l.b16 %v604
    %v639 = vunpack.c.l.b16 %v605
    %v640 = vpack.c.b16 %v625, %v624
    %v641 = vpack.c.b16 %v627, %v626
    %v642 = vpack.c.b16 %v629, %v628
    %v643 = vpack.c.b16 %v631, %v630
    %v644 = vpack.c.b16 %v633, %v632
    %v645 = vpack.c.b16 %v635, %v634
    %v646 = vpack.c.b16 %v637, %v636
    %v647 = vpack.c.b16 %v639, %v638
    %656 = vmatprep.subr.bf16.mxu0 0
    %657 = vmatpush1.bf16.msra.mxu0 %v640
    %658 = vmatprep.subr.bf16.mxu0 0
    %659 = vmatpush1.bf16.msra.mxu0 %v641
    %660 = vmatprep.subr.bf16.mxu0 0
    %661 = vmatpush1.bf16.msra.mxu0 %v642
    %662 = vmatprep.subr.bf16.mxu0 0
    %663 = vmatpush1.bf16.msra.mxu0 %v643
    %664 = vmatprep.subr.bf16.mxu0 0
    %665 = vmatpush1.bf16.msra.mxu0 %v644
    %666 = vmatprep.subr.bf16.mxu0 0
    %667 = vmatpush1.bf16.msra.mxu0 %v645
    %668 = vmatprep.subr.bf16.mxu0 0
    %669 = vmatpush1.bf16.msra.mxu0 %v646
    %670 = vmatprep.subr.bf16.mxu0 0
    %671 = vmatpush1.bf16.msra.mxu0 %v647
    %672 = vmatprep.subr.bf16.mxu0 0
    %673 = vmatpush1.bf16.msra.mxu0 0
    %674 = vmatprep.subr.bf16.mxu0 0
    %675 = vmatpush1.bf16.msra.mxu0 0
    %676 = vmatprep.subr.bf16.mxu0 0
    %677 = vmatpush1.bf16.msra.mxu0 0
    %678 = vmatprep.subr.bf16.mxu0 0
    %679 = vmatpush1.bf16.msra.mxu0 0
    %680 = vmatprep.subr.bf16.mxu0 0
    %681 = vmatpush1.bf16.msra.mxu0 0
    %682 = vmatprep.subr.bf16.mxu0 0
    %683 = vmatpush1.bf16.msra.mxu0 0
    %684 = vmatprep.subr.bf16.mxu0 0
    %685 = vmatpush1.bf16.msra.mxu0 0
    %686 = vmatprep.subr.bf16.mxu0 0
    %687 = vmatpush1.bf16.msra.mxu0 0
    %688 = vmatprep.mubr.bf16.mxu0 0
    %689 = vmatmul.mubr.bf16.gmra.mrb[0].mxu0 0
    %v690 = vpop.f32.mrb[0].mxu0
    %v691 = vadd.f32 0.0, %v690
    %v692 = vpop.f32.mrb[0].mxu0
    %v693 = vpop.f32.mrb[0].mxu0
    %v694 = vpop.f32.mrb[0].mxu0
    %695 = vdwg.mxu0
    %v696 = vadd.f32 %v607, %v691
    %v697 = vtanh.pop %v696
    %698 = vst [vmem:[#allocation2] sm:$0xff] %v697
    %v699 = vpack.c.bf16 %v697, %v697
    %s700 = scalar_lea.vmem [#allocation3], 8
    %v701 = vld [vmem:[%s700] sm:$0xff]
    %v702 = vadd.f32 %v701, %v416
    %703 = vmatprep.subr.bf16.mxu0 0
    %704 = vmatpush1.bf16.msra.mxu0 %v640
    %705 = vmatprep.subr.bf16.mxu0 0
    %706 = vmatpush1.bf16.msra.mxu0 %v641
    %707 = vmatprep.subr.bf16.mxu0 0
    %708 = vmatpush1.bf16.msra.mxu0 %v642
    %709 = vmatprep.subr.bf16.mxu0 0
    %710 = vmatpush1.bf16.msra.mxu0 %v643
    %711 = vmatprep.subr.bf16.mxu0 0
    %712 = vmatpush1.bf16.msra.mxu0 %v644
    %713 = vmatprep.subr.bf16.mxu0 0
    %714 = vmatpush1.bf16.msra.mxu0 %v645
    %715 = vmatprep.subr.bf16.mxu0 0
    %716 = vmatpush1.bf16.msra.mxu0 %v646
    %717 = vmatprep.subr.bf16.mxu0 0
    %718 = vmatpush1.bf16.msra.mxu0 %v647
    %719 = vmatprep.subr.bf16.mxu0 0
    %720 = vmatpush1.bf16.msra.mxu0 0
    %721 = vmatprep.subr.bf16.mxu0 0
    %722 = vmatpush1.bf16.msra.mxu0 0
    %723 = vmatprep.subr.bf16.mxu0 0
    %724 = vmatpush1.bf16.msra.mxu0 0
    %725 = vmatprep.subr.bf16.mxu0 0
    %726 = vmatpush1.bf16.msra.mxu0 0
    %727 = vmatprep.subr.bf16.mxu0 0
    %728 = vmatpush1.bf16.msra.mxu0 0
    %729 = vmatprep.subr.bf16.mxu0 0
    %730 = vmatpush1.bf16.msra.mxu0 0
    %731 = vmatprep.subr.bf16.mxu0 0
    %732 = vmatpush1.bf16.msra.mxu0 0
    %733 = vmatprep.subr.bf16.mxu0 0
    %734 = vmatpush1.bf16.msra.mxu0 0
    %735 = vmatprep.mubr.bf16.mxu0 0
    %736 = vmatmul.mubr.bf16.gmra.mrb[0].mxu0 %v699
    %v737 = vpop.f32.mrb[0].mxu0
    %v738 = vadd.f32 0.0, %v737
    %v739 = vpop.f32.mrb[0].mxu0
    %v740 = vpop.f32.mrb[0].mxu0
    %v741 = vpop.f32.mrb[0].mxu0
    %742 = vdwg.mxu0
    %v743 = vadd.f32 %v702, %v738
    %v744 = vtanh.pop %v743
    %s745 = scalar_lea.vmem [#allocation2], 8
    %746 = vst [vmem:[%s745] sm:$0xff] %v744
    %v747 = vpack.c.bf16 %v744, %v744
    %s748 = scalar_lea.vmem [#allocation3], 16
    %v749 = vld [vmem:[%s748] sm:$0xff]
    %v750 = vadd.f32 %v749, %v416
    %751 = vmatprep.subr.bf16.mxu0 0
    %752 = vmatpush1.bf16.msra.mxu0 %v640
    %753 = vmatprep.subr.bf16.mxu0 0
    %754 = vmatpush1.bf16.msra.mxu0 %v641
    %755 = vmatprep.subr.bf16.mxu0 0
    %756 = vmatpush1.bf16.msra.mxu0 %v642
    %757 = vmatprep.subr.bf16.mxu0 0
    %758 = vmatpush1.bf16.msra.mxu0 %v643
    %759 = vmatprep.subr.bf16.mxu0 0
    %760 = vmatpush1.bf16.msra.mxu0 %v644
    %761 = vmatprep.subr.bf16.mxu0 0
    %762 = vmatpush1.bf16.msra.mxu0 %v645
    %763 = vmatprep.subr.bf16.mxu0 0
    %764 = vmatpush1.bf16.msra.mxu0 %v646
    %765 = vmatprep.subr.bf16.mxu0 0
    %766 = vmatpush1.bf16.msra.mxu0 %v647
    %767 = vmatprep.subr.bf16.mxu0 0
    %768 = vmatpush1.bf16.msra.mxu0 0
    %769 = vmatprep.subr.bf16.mxu0 0
    %770 = vmatpush1.bf16.msra.mxu0 0
    %771 = vmatprep.subr.bf16.mxu0 0
    %772 = vmatpush1.bf16.msra.mxu0 0
    %773 = vmatprep.subr.bf16.mxu0 0
    %774 = vmatpush1.bf16.msra.mxu0 0
    %775 = vmatprep.subr.bf16.mxu0 0
    %776 = vmatpush1.bf16.msra.mxu0 0
    %777 = vmatprep.subr.bf16.mxu0 0
    %778 = vmatpush1.bf16.msra.mxu0 0
    %779 = vmatprep.subr.bf16.mxu0 0
    %780 = vmatpush1.bf16.msra.mxu0 0
    %781 = vmatprep.subr.bf16.mxu0 0
    %782 = vmatpush1.bf16.msra.mxu0 0
    %783 = vmatprep.mubr.bf16.mxu0 0
    %784 = vmatmul.mubr.bf16.gmra.mrb[0].mxu0 %v747
    %v785 = vpop.f32.mrb[0].mxu0
    %v786 = vadd.f32 0.0, %v785
    %v787 = vpop.f32.mrb[0].mxu0
    %v788 = vpop.f32.mrb[0].mxu0
    %v789 = vpop.f32.mrb[0].mxu0
    %790 = vdwg.mxu0
    %v791 = vadd.f32 %v750, %v786
    %v792 = vtanh.pop %v791
    %s793 = scalar_lea.vmem [#allocation2], 16
    %794 = vst [vmem:[%s793] sm:$0xff] %v792
    %v795 = vpack.c.bf16 %v792, %v792
    %s796 = scalar_lea.vmem [#allocation3], 24
    %v797 = vld [vmem:[%s796] sm:$0xff]
    %v798 = vadd.f32 %v797, %v416
    %799 = vmatprep.subr.bf16.mxu0 0
    %800 = vmatpush1.bf16.msra.mxu0 %v640
    %801 = vmatprep.subr.bf16.mxu0 0
    %802 = vmatpush1.bf16.msra.mxu0 %v641
    %803 = vmatprep.subr.bf16.mxu0 0
    %804 = vmatpush1.bf16.msra.mxu0 %v642
    %805 = vmatprep.subr.bf16.mxu0 0
    %806 = vmatpush1.bf16.msra.mxu0 %v643
    %807 = vmatprep.subr.bf16.mxu0 0
    %808 = vmatpush1.bf16.msra.mxu0 %v644
    %809 = vmatprep.subr.bf16.mxu0 0
    %810 = vmatpush1.bf16.msra.mxu0 %v645
    %811 = vmatprep.subr.bf16.mxu0 0
    %812 = vmatpush1.bf16.msra.mxu0 %v646
    %813 = vmatprep.subr.bf16.mxu0 0
    %814 = vmatpush1.bf16.msra.mxu0 %v647
    %815 = vmatprep.subr.bf16.mxu0 0
    %816 = vmatpush1.bf16.msra.mxu0 0
    %817 = vmatprep.subr.bf16.mxu0 0
    %818 = vmatpush1.bf16.msra.mxu0 0
    %819 = vmatprep.subr.bf16.mxu0 0
    %820 = vmatpush1.bf16.msra.mxu0 0
    %821 = vmatprep.subr.bf16.mxu0 0
    %822 = vmatpush1.bf16.msra.mxu0 0
    %823 = vmatprep.subr.bf16.mxu0 0
    %824 = vmatpush1.bf16.msra.mxu0 0
    %825 = vmatprep.subr.bf16.mxu0 0
    %826 = vmatpush1.bf16.msra.mxu0 0
    %827 = vmatprep.subr.bf16.mxu0 0
    %828 = vmatpush1.bf16.msra.mxu0 0
    %829 = vmatprep.subr.bf16.mxu0 0
    %830 = vmatpush1.bf16.msra.mxu0 0
    %831 = vmatprep.mubr.bf16.mxu0 0
    %832 = vmatmul.mubr.bf16.gmra.mrb[0].mxu0 %v795
    %v833 = vpop.f32.mrb[0].mxu0
    %v834 = vadd.f32 0.0, %v833
    %v835 = vpop.f32.mrb[0].mxu0
    %v836 = vpop.f32.mrb[0].mxu0
    %v837 = vpop.f32.mrb[0].mxu0
    %838 = vdwg.mxu0
    %v839 = vadd.f32 %v798, %v834
    %v840 = vtanh.pop %v839
    %s841 = scalar_lea.vmem [#allocation2], 24
    %842 = vst [vmem:[%s841] sm:$0xff] %v840
    %v843 = vpack.c.bf16 %v840, %v840
    %s844 = scalar_lea.vmem [#allocation3], 32
    %v845 = vld [vmem:[%s844] sm:$0xff]
    %v846 = vadd.f32 %v845, %v416
    %847 = vmatprep.subr.bf16.mxu0 0
    %848 = vmatpush1.bf16.msra.mxu0 %v640
    %849 = vmatprep.subr.bf16.mxu0 0
    %850 = vmatpush1.bf16.msra.mxu0 %v641
    %851 = vmatprep.subr.bf16.mxu0 0
    %852 = vmatpush1.bf16.msra.mxu0 %v642
    %853 = vmatprep.subr.bf16.mxu0 0
    %854 = vmatpush1.bf16.msra.mxu0 %v643
    %855 = vmatprep.subr.bf16.mxu0 0
    %856 = vmatpush1.bf16.msra.mxu0 %v644
    %857 = vmatprep.subr.bf16.mxu0 0
    %858 = vmatpush1.bf16.msra.mxu0 %v645
    %859 = vmatprep.subr.bf16.mxu0 0
    %860 = vmatpush1.bf16.msra.mxu0 %v646
    %861 = vmatprep.subr.bf16.mxu0 0
    %862 = vmatpush1.bf16.msra.mxu0 %v647
    %863 = vmatprep.subr.bf16.mxu0 0
    %864 = vmatpush1.bf16.msra.mxu0 0
    %865 = vmatprep.subr.bf16.mxu0 0
    %866 = vmatpush1.bf16.msra.mxu0 0
    %867 = vmatprep.subr.bf16.mxu0 0
    %868 = vmatpush1.bf16.msra.mxu0 0
    %869 = vmatprep.subr.bf16.mxu0 0
    %870 = vmatpush1.bf16.msra.mxu0 0
    %871 = vmatprep.subr.bf16.mxu0 0
    %872 = vmatpush1.bf16.msra.mxu0 0
    %873 = vmatprep.subr.bf16.mxu0 0
    %874 = vmatpush1.bf16.msra.mxu0 0
    %875 = vmatprep.subr.bf16.mxu0 0
    %876 = vmatpush1.bf16.msra.mxu0 0
    %877 = vmatprep.subr.bf16.mxu0 0
    %878 = vmatpush1.bf16.msra.mxu0 0
    %879 = vmatprep.mubr.bf16.mxu0 0
    %880 = vmatmul.mubr.bf16.gmra.mrb[0].mxu0 %v843
    %v881 = vpop.f32.mrb[0].mxu0
    %v882 = vadd.f32 0.0, %v881
    %v883 = vpop.f32.mrb[0].mxu0
    %v884 = vpop.f32.mrb[0].mxu0
    %v885 = vpop.f32.mrb[0].mxu0
    %886 = vdwg.mxu0
    %v887 = vadd.f32 %v846, %v882
    %v888 = vtanh.pop %v887
    %s889 = scalar_lea.vmem [#allocation2], 32
    %890 = vst [vmem:[%s889] sm:$0xff] %v888
    %v891 = vpack.c.bf16 %v888, %v888
    %s892 = scalar_lea.vmem [#allocation3], 40
    %v893 = vld [vmem:[%s892] sm:$0xff]
    %v894 = vadd.f32 %v893, %v416
    %895 = vmatprep.subr.bf16.mxu0 0
    %896 = vmatpush1.bf16.msra.mxu0 %v640
    %897 = vmatprep.subr.bf16.mxu0 0
    %898 = vmatpush1.bf16.msra.mxu0 %v641
    %899 = vmatprep.subr.bf16.mxu0 0
    %900 = vmatpush1.bf16.msra.mxu0 %v642
    %901 = vmatprep.subr.bf16.mxu0 0
    %902 = vmatpush1.bf16.msra.mxu0 %v643
    %903 = vmatprep.subr.bf16.mxu0 0
    %904 = vmatpush1.bf16.msra.mxu0 %v644
    %905 = vmatprep.subr.bf16.mxu0 0
    %906 = vmatpush1.bf16.msra.mxu0 %v645
    %907 = vmatprep.subr.bf16.mxu0 0
    %908 = vmatpush1.bf16.msra.mxu0 %v646
    %909 = vmatprep.subr.bf16.mxu0 0
    %910 = vmatpush1.bf16.msra.mxu0 %v647
    %911 = vmatprep.subr.bf16.mxu0 0
    %912 = vmatpush1.bf16.msra.mxu0 0
    %913 = vmatprep.subr.bf16.mxu0 0
    %914 = vmatpush1.bf16.msra.mxu0 0
    %915 = vmatprep.subr.bf16.mxu0 0
    %916 = vmatpush1.bf16.msra.mxu0 0
    %917 = vmatprep.subr.bf16.mxu0 0
    %918 = vmatpush1.bf16.msra.mxu0 0
    %919 = vmatprep.subr.bf16.mxu0 0
    %920 = vmatpush1.bf16.msra.mxu0 0
    %921 = vmatprep.subr.bf16.mxu0 0
    %922 = vmatpush1.bf16.msra.mxu0 0
    %923 = vmatprep.subr.bf16.mxu0 0
    %924 = vmatpush1.bf16.msra.mxu0 0
    %925 = vmatprep.subr.bf16.mxu0 0
    %926 = vmatpush1.bf16.msra.mxu0 0
    %927 = vmatprep.mubr.bf16.mxu0 0
    %928 = vmatmul.mubr.bf16.gmra.mrb[0].mxu0 %v891
    %v929 = vpop.f32.mrb[0].mxu0
    %v930 = vadd.f32 0.0, %v929
    %v931 = vpop.f32.mrb[0].mxu0
    %v932 = vpop.f32.mrb[0].mxu0
    %v933 = vpop.f32.mrb[0].mxu0
    %934 = vdwg.mxu0
    %v935 = vadd.f32 %v894, %v930
    %v936 = vtanh.pop %v935
    %s937 = scalar_lea.vmem [#allocation2], 40
    %938 = vst [vmem:[%s937] sm:$0xff] %v936
    %v939 = vpack.c.bf16 %v936, %v936
    %s940 = scalar_lea.vmem [#allocation3], 48
    %v941 = vld [vmem:[%s940] sm:$0xff]
    %v942 = vadd.f32 %v941, %v416
    %943 = vmatprep.subr.bf16.mxu0 0
    %944 = vmatpush1.bf16.msra.mxu0 %v640
    %945 = vmatprep.subr.bf16.mxu0 0
    %946 = vmatpush1.bf16.msra.mxu0 %v641
    %947 = vmatprep.subr.bf16.mxu0 0
    %948 = vmatpush1.bf16.msra.mxu0 %v642
    %949 = vmatprep.subr.bf16.mxu0 0
    %950 = vmatpush1.bf16.msra.mxu0 %v643
    %951 = vmatprep.subr.bf16.mxu0 0
    %952 = vmatpush1.bf16.msra.mxu0 %v644
    %953 = vmatprep.subr.bf16.mxu0 0
    %954 = vmatpush1.bf16.msra.mxu0 %v645
    %955 = vmatprep.subr.bf16.mxu0 0
    %956 = vmatpush1.bf16.msra.mxu0 %v646
    %957 = vmatprep.subr.bf16.mxu0 0
    %958 = vmatpush1.bf16.msra.mxu0 %v647
    %959 = vmatprep.subr.bf16.mxu0 0
    %960 = vmatpush1.bf16.msra.mxu0 0
    %961 = vmatprep.subr.bf16.mxu0 0
    %962 = vmatpush1.bf16.msra.mxu0 0
    %963 = vmatprep.subr.bf16.mxu0 0
    %964 = vmatpush1.bf16.msra.mxu0 0
    %965 = vmatprep.subr.bf16.mxu0 0
    %966 = vmatpush1.bf16.msra.mxu0 0
    %967 = vmatprep.subr.bf16.mxu0 0
    %968 = vmatpush1.bf16.msra.mxu0 0
    %969 = vmatprep.subr.bf16.mxu0 0
    %970 = vmatpush1.bf16.msra.mxu0 0
    %971 = vmatprep.subr.bf16.mxu0 0
    %972 = vmatpush1.bf16.msra.mxu0 0
    %973 = vmatprep.subr.bf16.mxu0 0
    %974 = vmatpush1.bf16.msra.mxu0 0
    %975 = vmatprep.mubr.bf16.mxu0 0
    %976 = vmatmul.mubr.bf16.gmra.mrb[0].mxu0 %v939
    %v977 = vpop.f32.mrb[0].mxu0
    %v978 = vadd.f32 0.0, %v977
    %v979 = vpop.f32.mrb[0].mxu0
    %v980 = vpop.f32.mrb[0].mxu0
    %v981 = vpop.f32.mrb[0].mxu0
    %982 = vdwg.mxu0
    %v983 = vadd.f32 %v942, %v978
    %v984 = vtanh.pop %v983
    %s985 = scalar_lea.vmem [#allocation2], 48
    %986 = vst [vmem:[%s985] sm:$0xff] %v984
    %v987 = vpack.c.bf16 %v984, %v984
    %s988 = scalar_lea.vmem [#allocation3], 56
    %v989 = vld [vmem:[%s988] sm:$0xff]
    %v990 = vadd.f32 %v989, %v416
    %991 = vmatprep.subr.bf16.mxu0 0
    %992 = vmatpush1.bf16.msra.mxu0 %v640
    %993 = vmatprep.subr.bf16.mxu0 0
    %994 = vmatpush1.bf16.msra.mxu0 %v641
    %995 = vmatprep.subr.bf16.mxu0 0
    %996 = vmatpush1.bf16.msra.mxu0 %v642
    %997 = vmatprep.subr.bf16.mxu0 0
    %998 = vmatpush1.bf16.msra.mxu0 %v643
    %999 = vmatprep.subr.bf16.mxu0 0
    %1000 = vmatpush1.bf16.msra.mxu0 %v644
    %1001 = vmatprep.subr.bf16.mxu0 0
    %1002 = vmatpush1.bf16.msra.mxu0 %v645
    %1003 = vmatprep.subr.bf16.mxu0 0
    %1004 = vmatpush1.bf16.msra.mxu0 %v646
    %1005 = vmatprep.subr.bf16.mxu0 0
    %1006 = vmatpush1.bf16.msra.mxu0 %v647
    %1007 = vmatprep.subr.bf16.mxu0 0
    %1008 = vmatpush1.bf16.msra.mxu0 0
    %1009 = vmatprep.subr.bf16.mxu0 0
    %1010 = vmatpush1.bf16.msra.mxu0 0
    %1011 = vmatprep.subr.bf16.mxu0 0
    %1012 = vmatpush1.bf16.msra.mxu0 0
    %1013 = vmatprep.subr.bf16.mxu0 0
    %1014 = vmatpush1.bf16.msra.mxu0 0
    %1015 = vmatprep.subr.bf16.mxu0 0
    %1016 = vmatpush1.bf16.msra.mxu0 0
    %1017 = vmatprep.subr.bf16.mxu0 0
    %1018 = vmatpush1.bf16.msra.mxu0 0
    %1019 = vmatprep.subr.bf16.mxu0 0
    %1020 = vmatpush1.bf16.msra.mxu0 0
    %1021 = vmatprep.subr.bf16.mxu0 0
    %1022 = vmatpush1.bf16.msra.mxu0 0
    %1023 = vmatprep.mubr.bf16.mxu0 0
    %1024 = vmatmul.mubr.bf16.gmra.mrb[0].mxu0 %v987
    %v1025 = vpop.f32.mrb[0].mxu0
    %v1026 = vadd.f32 0.0, %v1025
    %v1027 = vpop.f32.mrb[0].mxu0
    %v1028 = vpop.f32.mrb[0].mxu0
    %v1029 = vpop.f32.mrb[0].mxu0
    %1030 = vdwg.mxu0
    %v1031 = vadd.f32 %v990, %v1026
    %v1032 = vtanh.pop %v1031
    %s1033 = scalar_lea.vmem [#allocation2], 56
    %1034 = vst [vmem:[%s1033] sm:$0xff] %v1032
    %v1035 = vld [vmem:[#allocation2] sm:$0xff]
    %v1036 = vld [vmem:[#allocation2 + $0x8] sm:$0xff]
    %v1037 = vld [vmem:[#allocation2 + $0x10] sm:$0xff]
    %v1038 = vld [vmem:[#allocation2 + $0x18] sm:$0xff]
    %v1039 = vld [vmem:[#allocation2 + $0x20] sm:$0xff]
    %v1040 = vld [vmem:[#allocation2 + $0x28] sm:$0xff]
    %v1041 = vld [vmem:[#allocation2 + $0x30] sm:$0xff]
    %v1042 = vld [vmem:[#allocation2 + $0x38] sm:$0xff]
    %v1043 = vpack.c.bf16 %v1036, %v1035
    %v1044 = vpack.c.bf16 %v1038, %v1037
    %v1045 = vpack.c.bf16 %v1040, %v1039
    %v1046 = vpack.c.bf16 %v1042, %v1041
    %v1047 = vld [vmem:[#allocation18] sm:$0xf]
    %v1048 = vld [vmem:[#allocation18 + $0x4] sm:$0xf]
    %v1049 = vld [vmem:[#allocation18 + $0x8] sm:$0xf]
    %v1050 = vld [vmem:[#allocation18 + $0xc] sm:$0xf]
    %v1051 = vld [vmem:[#allocation18 + $0x10] sm:$0xf]
    %v1052 = vld [vmem:[#allocation18 + $0x14] sm:$0xf]
    %v1053 = vld [vmem:[#allocation18 + $0x18] sm:$0xf]
    %v1054 = vld [vmem:[#allocation18 + $0x1c] sm:$0xf]
    %v1055 = vld [vmem:[#allocation18 + $0x20] sm:$0xf]
    %v1056 = vld [vmem:[#allocation18 + $0x24] sm:$0xf]
    %v1057 = vld [vmem:[#allocation18 + $0x28] sm:$0xf]
    %v1058 = vld [vmem:[#allocation18 + $0x2c] sm:$0xf]
    %v1059 = vld [vmem:[#allocation18 + $0x30] sm:$0xf]
    %v1060 = vld [vmem:[#allocation18 + $0x34] sm:$0xf]
    %v1061 = vld [vmem:[#allocation18 + $0x38] sm:$0xf]
    %v1062 = vld [vmem:[#allocation18 + $0x3c] sm:$0xf]
    %v1063 = vld [vmem:[#allocation19] sm:$0x1]
    %v1065 = vlaneseq
    %v1066 = vshrl.u32 %v1065, 7
    %v1067 = vsub.s32 0, %v1066
    %v1068 = vrot.slane %v1063, %v1067
    %v1086 = vunpack.c.l.b16 %v1047
    %v1087 = vunpack.c.l.b16 %v1048
    %v1088 = vunpack.c.l.b16 %v1049
    %v1089 = vunpack.c.l.b16 %v1050
    %v1090 = vunpack.c.l.b16 %v1051
    %v1091 = vunpack.c.l.b16 %v1052
    %v1092 = vunpack.c.l.b16 %v1053
    %v1093 = vunpack.c.l.b16 %v1054
    %v1094 = vunpack.c.l.b16 %v1055
    %v1095 = vunpack.c.l.b16 %v1056
    %v1096 = vunpack.c.l.b16 %v1057
    %v1097 = vunpack.c.l.b16 %v1058
    %v1098 = vunpack.c.l.b16 %v1059
    %v1099 = vunpack.c.l.b16 %v1060
    %v1100 = vunpack.c.l.b16 %v1061
    %v1101 = vunpack.c.l.b16 %v1062
    %v1102 = vpack.c.b16 %v1087, %v1086
    %v1103 = vpack.c.b16 %v1089, %v1088
    %v1104 = vpack.c.b16 %v1091, %v1090
    %v1105 = vpack.c.b16 %v1093, %v1092
    %v1106 = vpack.c.b16 %v1095, %v1094
    %v1107 = vpack.c.b16 %v1097, %v1096
    %v1108 = vpack.c.b16 %v1099, %v1098
    %v1109 = vpack.c.b16 %v1101, %v1100
    %1118 = vmatprep.subr.bf16.mxu0 0
    %1119 = vmatpush1.bf16.msra.mxu0 %v1102
    %1120 = vmatprep.subr.bf16.mxu0 0
    %1121 = vmatpush1.bf16.msra.mxu0 %v1103
    %1122 = vmatprep.subr.bf16.mxu0 0
    %1123 = vmatpush1.bf16.msra.mxu0 %v1104
    %1124 = vmatprep.subr.bf16.mxu0 0
    %1125 = vmatpush1.bf16.msra.mxu0 %v1105
    %1126 = vmatprep.subr.bf16.mxu0 0
    %1127 = vmatpush1.bf16.msra.mxu0 %v1106
    %1128 = vmatprep.subr.bf16.mxu0 0
    %1129 = vmatpush1.bf16.msra.mxu0 %v1107
    %1130 = vmatprep.subr.bf16.mxu0 0
    %1131 = vmatpush1.bf16.msra.mxu0 %v1108
    %1132 = vmatprep.subr.bf16.mxu0 0
    %1133 = vmatpush1.bf16.msra.mxu0 %v1109
    %1134 = vmatprep.subr.bf16.mxu0 0
    %1135 = vmatpush1.bf16.msra.mxu0 0
    %1136 = vmatprep.subr.bf16.mxu0 0
    %1137 = vmatpush1.bf16.msra.mxu0 0
    %1138 = vmatprep.subr.bf16.mxu0 0
    %1139 = vmatpush1.bf16.msra.mxu0 0
    %1140 = vmatprep.subr.bf16.mxu0 0
    %1141 = vmatpush1.bf16.msra.mxu0 0
    %1142 = vmatprep.subr.bf16.mxu0 0
    %1143 = vmatpush1.bf16.msra.mxu0 0
    %1144 = vmatprep.subr.bf16.mxu0 0
    %1145 = vmatpush1.bf16.msra.mxu0 0
    %1146 = vmatprep.subr.bf16.mxu0 0
    %1147 = vmatpush1.bf16.msra.mxu0 0
    %1148 = vmatprep.subr.bf16.mxu0 0
    %1149 = vmatpush1.bf16.msra.mxu0 0
    %1150 = vmatprep.mubr.bf16.mxu0 0
    %1151 = vmatmul.mubr.bf16.gmra.mrb[0].mxu0 %v1043
    %v1152 = vpop.f32.mrb[0].mxu0
    %v1153 = vadd.f32 %v1068, %v1152
    %v1154 = vpop.f32.mrb[0].mxu0
    %v1155 = vpop.f32.mrb[0].mxu0
    %v1156 = vadd.f32 %v1068, %v1155
    %v1157 = vpop.f32.mrb[0].mxu0
    %1158 = vmatprep.mubr.bf16.mxu0 0
    %1159 = vmatmul.mubr.bf16.gmra.mrb[0].mxu0 %v1044
    %v1160 = vpop.f32.mrb[0].mxu0
    %v1161 = vadd.f32 %v1068, %v1160
    %v1162 = vpop.f32.mrb[0].mxu0
    %v1163 = vpop.f32.mrb[0].mxu0
    %v1164 = vadd.f32 %v1068, %v1163
    %v1165 = vpop.f32.mrb[0].mxu0
    %1166 = vmatprep.mubr.bf16.mxu0 0
    %1167 = vmatmul.mubr.bf16.gmra.mrb[0].mxu0 %v1045
    %v1168 = vpop.f32.mrb[0].mxu0
    %v1169 = vadd.f32 %v1068, %v1168
    %v1170 = vpop.f32.mrb[0].mxu0
    %v1171 = vpop.f32.mrb[0].mxu0
    %v1172 = vadd.f32 %v1068, %v1171
    %v1173 = vpop.f32.mrb[0].mxu0
    %1174 = vmatprep.mubr.bf16.mxu0 0
    %1175 = vmatmul.mubr.bf16.gmra.mrb[0].mxu0 %v1046
    %v1176 = vpop.f32.mrb[0].mxu0
    %v1177 = vadd.f32 %v1068, %v1176
    %v1178 = vpop.f32.mrb[0].mxu0
    %v1179 = vpop.f32.mrb[0].mxu0
    %v1180 = vadd.f32 %v1068, %v1179
    %v1181 = vpop.f32.mrb[0].mxu0
    %1182 = vdwg.mxu0
    %v1183 = vmax.f32 %v1153, 0.0
    %v1184 = vmax.f32 %v1156, 0.0
    %v1185 = vmax.f32 %v1161, 0.0
    %v1186 = vmax.f32 %v1164, 0.0
    %v1187 = vmax.f32 %v1169, 0.0
    %v1188 = vmax.f32 %v1172, 0.0
    %v1189 = vmax.f32 %v1177, 0.0
    %v1190 = vmax.f32 %v1180, 0.0
    %v1191 = vpack.c.bf16 %v1184, %v1183
    %v1192 = vpack.c.bf16 %v1186, %v1185
    %v1193 = vpack.c.bf16 %v1188, %v1187
    %v1194 = vpack.c.bf16 %v1190, %v1189
    %v1195 = vld [vmem:[#allocation21] sm:$0xf]
    %v1196 = vld [vmem:[#allocation21 + $0x4] sm:$0xf]
    %v1197 = vld [vmem:[#allocation21 + $0x8] sm:$0xf]
    %v1198 = vld [vmem:[#allocation21 + $0xc] sm:$0xf]
    %v1199 = vld [vmem:[#allocation21 + $0x10] sm:$0xf]
    %v1200 = vld [vmem:[#allocation21 + $0x14] sm:$0xf]
    %v1201 = vld [vmem:[#allocation21 + $0x18] sm:$0xf]
    %v1202 = vld [vmem:[#allocation21 + $0x1c] sm:$0xf]
    %v1203 = vld [vmem:[#allocation21 + $0x20] sm:$0xf]
    %v1204 = vld [vmem:[#allocation21 + $0x24] sm:$0xf]
    %v1205 = vld [vmem:[#allocation21 + $0x28] sm:$0xf]
    %v1206 = vld [vmem:[#allocation21 + $0x2c] sm:$0xf]
    %v1207 = vld [vmem:[#allocation21 + $0x30] sm:$0xf]
    %v1208 = vld [vmem:[#allocation21 + $0x34] sm:$0xf]
    %v1209 = vld [vmem:[#allocation21 + $0x38] sm:$0xf]
    %v1210 = vld [vmem:[#allocation21 + $0x3c] sm:$0xf]
    %v1211 = vld [vmem:[#allocation22] sm:$0x1]
    %v1213 = vlaneseq
    %v1214 = vshrl.u32 %v1213, 7
    %v1215 = vsub.s32 0, %v1214
    %v1216 = vrot.slane %v1211, %v1215
    %v1234 = vunpack.c.l.b16 %v1195
    %v1235 = vunpack.c.l.b16 %v1196
    %v1236 = vunpack.c.l.b16 %v1197
    %v1237 = vunpack.c.l.b16 %v1198
    %v1238 = vunpack.c.l.b16 %v1199
    %v1239 = vunpack.c.l.b16 %v1200
    %v1240 = vunpack.c.l.b16 %v1201
    %v1241 = vunpack.c.l.b16 %v1202
    %v1242 = vunpack.c.l.b16 %v1203
    %v1243 = vunpack.c.l.b16 %v1204
    %v1244 = vunpack.c.l.b16 %v1205
    %v1245 = vunpack.c.l.b16 %v1206
    %v1246 = vunpack.c.l.b16 %v1207
    %v1247 = vunpack.c.l.b16 %v1208
    %v1248 = vunpack.c.l.b16 %v1209
    %v1249 = vunpack.c.l.b16 %v1210
    %v1250 = vpack.c.b16 %v1235, %v1234
    %v1251 = vpack.c.b16 %v1237, %v1236
    %v1252 = vpack.c.b16 %v1239, %v1238
    %v1253 = vpack.c.b16 %v1241, %v1240
    %v1254 = vpack.c.b16 %v1243, %v1242
    %v1255 = vpack.c.b16 %v1245, %v1244
    %v1256 = vpack.c.b16 %v1247, %v1246
    %v1257 = vpack.c.b16 %v1249, %v1248
    %1266 = vmatprep.subr.bf16.mxu0 0
    %1267 = vmatpush1.bf16.msra.mxu0 %v1250
    %1268 = vmatprep.subr.bf16.mxu0 0
    %1269 = vmatpush1.bf16.msra.mxu0 %v1251
    %1270 = vmatprep.subr.bf16.mxu0 0
    %1271 = vmatpush1.bf16.msra.mxu0 %v1252
    %1272 = vmatprep.subr.bf16.mxu0 0
    %1273 = vmatpush1.bf16.msra.mxu0 %v1253
    %1274 = vmatprep.subr.bf16.mxu0 0
    %1275 = vmatpush1.bf16.msra.mxu0 %v1254
    %1276 = vmatprep.subr.bf16.mxu0 0
    %1277 = vmatpush1.bf16.msra.mxu0 %v1255
    %1278 = vmatprep.subr.bf16.mxu0 0
    %1279 = vmatpush1.bf16.msra.mxu0 %v1256
    %1280 = vmatprep.subr.bf16.mxu0 0
    %1281 = vmatpush1.bf16.msra.mxu0 %v1257
    %1282 = vmatprep.subr.bf16.mxu0 0
    %1283 = vmatpush1.bf16.msra.mxu0 0
    %1284 = vmatprep.subr.bf16.mxu0 0
    %1285 = vmatpush1.bf16.msra.mxu0 0
    %1286 = vmatprep.subr.bf16.mxu0 0
    %1287 = vmatpush1.bf16.msra.mxu0 0
    %1288 = vmatprep.subr.bf16.mxu0 0
    %1289 = vmatpush1.bf16.msra.mxu0 0
    %1290 = vmatprep.subr.bf16.mxu0 0
    %1291 = vmatpush1.bf16.msra.mxu0 0
    %1292 = vmatprep.subr.bf16.mxu0 0
    %1293 = vmatpush1.bf16.msra.mxu0 0
    %1294 = vmatprep.subr.bf16.mxu0 0
    %1295 = vmatpush1.bf16.msra.mxu0 0
    %1296 = vmatprep.subr.bf16.mxu0 0
    %1297 = vmatpush1.bf16.msra.mxu0 0
    %1298 = vmatprep.mubr.bf16.mxu0 0
    %1299 = vmatmul.mubr.bf16.gmra.mrb[0].mxu0 %v1191
    %v1300 = vpop.f32.mrb[0].mxu0
    %v1301 = vadd.f32 %v1216, %v1300
    %v1302 = vpop.f32.mrb[0].mxu0
    %v1303 = vpop.f32.mrb[0].mxu0
    %v1304 = vadd.f32 %v1216, %v1303
    %v1305 = vpop.f32.mrb[0].mxu0
    %1306 = vmatprep.mubr.bf16.mxu0 0
    %1307 = vmatmul.mubr.bf16.gmra.mrb[0].mxu0 %v1192
    %v1308 = vpop.f32.mrb[0].mxu0
    %v1309 = vadd.f32 %v1216, %v1308
    %v1310 = vpop.f32.mrb[0].mxu0
    %v1311 = vpop.f32.mrb[0].mxu0
    %v1312 = vadd.f32 %v1216, %v1311
    %v1313 = vpop.f32.mrb[0].mxu0
    %1314 = vmatprep.mubr.bf16.mxu0 0
    %1315 = vmatmul.mubr.bf16.gmra.mrb[0].mxu0 %v1193
    %v1316 = vpop.f32.mrb[0].mxu0
    %v1317 = vadd.f32 %v1216, %v1316
    %v1318 = vpop.f32.mrb[0].mxu0
    %v1319 = vpop.f32.mrb[0].mxu0
    %v1320 = vadd.f32 %v1216, %v1319
    %v1321 = vpop.f32.mrb[0].mxu0
    %1322 = vmatprep.mubr.bf16.mxu0 0
    %1323 = vmatmul.mubr.bf16.gmra.mrb[0].mxu0 %v1194
    %v1324 = vpop.f32.mrb[0].mxu0
    %v1325 = vadd.f32 %v1216, %v1324
    %v1326 = vpop.f32.mrb[0].mxu0
    %v1327 = vpop.f32.mrb[0].mxu0
    %v1328 = vadd.f32 %v1216, %v1327
    %v1329 = vpop.f32.mrb[0].mxu0
    %1330 = vdwg.mxu0
    %1331 = vst [vmem:[#allocation24] sm:$0xff] %v1301
    %1332 = vst [vmem:[#allocation24 + $0x8] sm:$0xff] %v1304
    %1333 = vst [vmem:[#allocation24 + $0x10] sm:$0xff] %v1309
    %1334 = vst [vmem:[#allocation24 + $0x18] sm:$0xff] %v1312
    %1335 = vst [vmem:[#allocation24 + $0x20] sm:$0xff] %v1317
    %1336 = vst [vmem:[#allocation24 + $0x28] sm:$0xff] %v1320
    %1337 = vst [vmem:[#allocation24 + $0x30] sm:$0xff] %v1325
    %1338 = vst [vmem:[#allocation24 + $0x38] sm:$0xff] %v1328
    // Predicated region
    $region98: #{tpu_custom_call.1} parent=1 // pred_check
      _
    $region99: #{tpu_custom_call.1} parent=1 // pred_check_branch
      %1340 = sbr.rel (0) target = $region101
    $region100: #{tpu_custom_call.1} parent=1 // pred_region
      %s1342 = ssub.s32 1024, 1024
      %1343 = vsyncadd [#allocation6], %s1342
      %s1344 = sshll.u32 [#allocation24], 4
      %s1345 = int_to_ptr.vmem [resolvable:$true] %s1344
      %1350 = dma.vmem_to_hbm [thread:$0]  %s1345, 1024, %s12, [#allocation6], 128, 128, 8
    $region101: #{tpu_custom_call.1} parent=1 // pred_fallthru
      _
    // Predicated region
    $region102: #{tpu_custom_call.1} parent=1 // pred_check
      _
    $region103: #{tpu_custom_call.1} parent=1 // pred_check_branch
      %1352 = sbr.rel (0) target = $region105
    $region104: #{tpu_custom_call.1} parent=1 // pred_region
      %1353 = dma.done [#allocation6], 1024
    $region105: #{tpu_custom_call.1} parent=1 // pred_fallthru
      _
    %1354 = vsyncpa [#allocation5], 1
    %1355 = vsyncpa [#allocation8], 1
    %1356 = vsyncpa [#allocation11], 1
    %1357 = vsyncpa [#allocation14], 1
    %1358 = vsyncpa [#allocation17], 1
    %1359 = vsyncpa [#allocation20], 1
    %1360 = vsyncpa [#allocation23], 1
    %1361 = vsyncpa [#allocation6], 1

</llo_original>
